<compile_context>
chip_gen: v7x
topology: tpu7x:2x2x1
jax: 0.10.0
libtpu: 0.0.40
codegen_flags: <defaults>
</compile_context>

<pallas_src>
import functools

import jax
import jax.numpy as jnp
from jax.experimental import pallas as pl
from jax.experimental.pallas import tpu as pltpu

_INV_SQRT2 = 0.7071067811865476
_SQRT_2_OVER_PI = 0.7978845608028654
_GELU_C = 0.044715


def _gelu_tanh(x):
    """tanh-approx GELU: the tanh goes to the EUP (its own bundle slot) instead
    of a long erf polynomial on the VALU.  ~1e-3 max deviation from exact GELU."""
    c0 = jnp.asarray(_SQRT_2_OVER_PI, x.dtype)
    c1 = jnp.asarray(_GELU_C, x.dtype)
    return 0.5 * x * (1.0 + jnp.tanh(c0 * (x + c1 * x * x * x)))


def _gelu_exact(x):
    # nn.GELU() default (exact erf) -- used only by the f32 reference.
    return 0.5 * x * (1.0 + jax.lax.erf(x * jnp.float32(_INV_SQRT2)))


def ampc_kernel(x_ref, w1_ref, w2_ref, w3_ref, w4_ref, b123_ref, tail_ref,
                o_ref, *, act_dtype):
    x = x_ref[...]                     # (tile_b, d_in) f32
    b_all = b123_ref[...]              # (3, H) f32: rows [b1, b2, b3]
    tail = tail_ref[...]               # (3, C) f32: rows [b4, scale, offset]

    # Layer 1: K = d_in is tiny (8) -> an f32 dot costs the same MXU passes as
    # bf16 would, so keep full input precision.
    h = jnp.dot(x, w1_ref[...], preferred_element_type=jnp.float32)
    h = _gelu_tanh((h + b_all[0:1, :]).astype(act_dtype))

    # Layers 2-3: bf16 resident weights, f32 MXU accumulation; bias add + GELU
    # in act_dtype (bf16 on v6e/v7x, f32 on v5e).
    h = jnp.dot(h.astype(jnp.bfloat16), w2_ref[...],
                preferred_element_type=jnp.float32)
    h = _gelu_tanh((h + b_all[1:2, :]).astype(act_dtype))

    h = jnp.dot(h.astype(jnp.bfloat16), w3_ref[...],
                preferred_element_type=jnp.float32)
    h = _gelu_tanh((h + b_all[2:3, :]).astype(act_dtype))

    # Output layer + tanh + per-control affine rescale, all in f32.
    out = jnp.dot(h.astype(jnp.bfloat16), w4_ref[...],
                  preferred_element_type=jnp.float32) + tail[0:1, :]
    out = jnp.tanh(out)
    o_ref[...] = (out * tail[1:2, :] + tail[2:3, :]).astype(o_ref.dtype)


def _round_up(n, m):
    return ((n + m - 1) // m) * m


def _default_act_dtype():
    """bf16 activation math on chips with a bf16 VPU/EUP (v6e and newer);
    f32 on v5e and older (no bf16 VALU, bf16 would only add casts)."""
    try:
        kind = jax.devices()[0].device_kind.lower()
    except Exception:
        return jnp.float32
    for old in ("v2", "v3", "v4", "v5"):
        if old in kind:
            return jnp.float32
    return jnp.bfloat16


def _pick_tile_b(batch):
    """Big batch tiles amortize the ~0.35 us/grid-step overhead; prefer a tile
    that divides the (8-padded) batch so the pad / slice is skipped."""
    b8 = _round_up(batch, 8)
    if b8 <= 512:
        return b8
    for cand in range(512, 127, -8):      # largest multiple of 8 dividing B
        if batch % cand == 0:
            return cand
    return 512


def ampc_forward(x, params, scale, offset, *, tile_b=None, act_dtype=None):
    """x: (B, d_in) f32.  params: [(W, b)] * 4 with W stored as (in, out)
    (PyTorch's (out, in) pre-transposed).  scale/offset: (1, C) f32.
    Returns (B, C) f32."""
    (w1, b1), (w2, b2), (w3, b3), (w4, b4) = params
    B, d_in = x.shape
    H = w1.shape[1]
    C = w4.shape[1]

    if act_dtype is None:
        act_dtype = _default_act_dtype()
    if tile_b is None:
        tile_b = _pick_tile_b(B)

    # Layer 1 stays f32 (tiny K); layers 2-4 use bf16 weights (single MXU pass
    # per dot, half the resident-weight VMEM).
    w2b = w2.astype(jnp.bfloat16)
    w3b = w3.astype(jnp.bfloat16)
    w4b = w4.astype(jnp.bfloat16)

    # Pack the small per-layer vectors to cut DMA descriptors (7 inputs total).
    b123 = jnp.stack([b1, b2, b3], axis=0)                       # (3, H)
    tail = jnp.concatenate([b4.reshape(1, C),
                            scale.reshape(1, C),
                            offset.reshape(1, C)], axis=0)       # (3, C)

    n_tiles = pl.cdiv(B, tile_b)
    Bp = n_tiles * tile_b
    xp = x if Bp == B else jnp.pad(x, ((0, Bp - B), (0, 0)))

    def resident(shape):
        # Constant index_map -> block DMA'd into VMEM once, resident across
        # all grid steps.
        return pl.BlockSpec(shape, lambda i: (0, 0))

    kernel = functools.partial(ampc_kernel, act_dtype=act_dtype)

    out = pl.pallas_call(
        kernel,
        out_shape=jax.ShapeDtypeStruct((Bp, C), jnp.float32),
        grid=(n_tiles,),
        in_specs=[
            pl.BlockSpec((tile_b, d_in), lambda i: (i, 0)),      # x batch tile
            resident((d_in, H)),                                 # w1 (f32)
            resident((H, H)),                                    # w2 (bf16)
            resident((H, H)),                                    # w3 (bf16)
            resident((H, C)),                                    # w4 (bf16)
            resident((3, H)),                                    # b1|b2|b3
            resident((3, C)),                                    # b4|scale|offset
        ],
        out_specs=pl.BlockSpec((tile_b, C), lambda i: (i, 0)),
        compiler_params=pltpu.CompilerParams(
            dimension_semantics=("parallel",)),
    )(xp, w1, w2b, w3b, w4b, b123, tail)

    return out if Bp == B else out[:B]


def init_linear(key, fan_in, fan_out):
    """Deterministic init mirroring PyTorch's default Linear init
    (uniform in +/- 1/sqrt(fan_in)).  Weight returned as (in, out)."""
    kw, kb = jax.random.split(key)
    bound = 1.0 / jnp.sqrt(jnp.float32(fan_in))
    w = jax.random.uniform(kw, (fan_in, fan_out), jnp.float32, -bound, bound)
    b = jax.random.uniform(kb, (fan_out,), jnp.float32, -bound, bound)
    return w, b


def reference_forward(x, params, scale, offset):
    """Pure-f32, exact-erf reference mirroring the original PyTorch module."""
    (w1, b1), (w2, b2), (w3, b3), (w4, b4) = params
    h = _gelu_exact(x @ w1 + b1)
    h = _gelu_exact(h @ w2 + b2)
    h = _gelu_exact(h @ w3 + b3)
    out = jnp.tanh(h @ w4 + b4)
    return out * scale + offset


if __name__ == "__main__":
    # Problem sizes implied by the module.
    num_state, num_reference, num_control = 4, 4, 4
    control_ranges = [(-1.0, 1.0), (-2.0, 2.0), (0.0, 1.0), (-0.5, 0.5)]
    hidden = 256          # fixed by the module
    batch = 200           # small; not a multiple of 8 -> exercises ragged path

    d_in = num_state + num_reference
    key = jax.random.PRNGKey(0)
    k_x, k1, k2, k3, k4 = jax.random.split(key, 5)

    x = jax.random.normal(k_x, (batch, d_in), jnp.float32)
    params = [
        init_linear(k1, d_in, hidden),
        init_linear(k2, hidden, hidden),
        init_linear(k3, hidden, hidden),
        init_linear(k4, hidden, num_control),
    ]

    cmins = jnp.array([lo for lo, _ in control_ranges], jnp.float32)
    cmaxs = jnp.array([hi for _, hi in control_ranges], jnp.float32)
    scale = ((cmaxs - cmins) / 2.0).reshape(1, num_control)
    offset = ((cmaxs + cmins) / 2.0).reshape(1, num_control)

    ref = reference_forward(x, params, scale, offset)

    # Default path: single big batch tile (tile_b = round_up(200, 8) = 208).
    out = jax.jit(lambda *a: ampc_forward(*a))(x, params, scale, offset)
    out = jax.block_until_ready(out)
    assert out.shape == (batch, num_control)
    assert jnp.allclose(out, ref, atol=2e-2, rtol=2e-2), (
        "default-tile kernel mismatch vs f32 reference: "
        f"max_abs_err={float(jnp.max(jnp.abs(out - ref)))}")

    # Multi-step grid path: 64-row tiles -> 4 grid steps with resident weights.
    out_t = jax.jit(lambda *a: ampc_forward(*a, tile_b=64))(
        x, params, scale, offset)
    out_t = jax.block_until_ready(out_t)
    assert out_t.shape == (batch, num_control)
    assert jnp.allclose(out_t, ref, atol=2e-2, rtol=2e-2), (
        "tiled kernel mismatch vs f32 reference: "
        f"max_abs_err={float(jnp.max(jnp.abs(out_t - ref)))}")

    print("KERNEL_OK")
</pallas_src>

<mosaic_0001>
module attributes {stable_mosaic.version = 11 : i64} {
  func.func @ampc_kernel(%arg0: i32, %arg1: memref<200x8xf32, #tpu.memory_space<vmem>>, %arg2: memref<8x256xf32, #tpu.memory_space<vmem>>, %arg3: memref<256x256xbf16, #tpu.memory_space<vmem>>, %arg4: memref<256x256xbf16, #tpu.memory_space<vmem>>, %arg5: memref<256x4xbf16, #tpu.memory_space<vmem>>, %arg6: memref<3x256xf32, #tpu.memory_space<vmem>>, %arg7: memref<3x4xf32, #tpu.memory_space<vmem>>, %arg8: memref<200x4xf32, #tpu.memory_space<vmem>>) attributes {dimension_semantics = [#tpu.dimension_semantics<parallel>], iteration_bounds = array<i64: 1>, scalar_prefetch = 0 : i64, scratch_operands = 0 : i64, tpu.core_type = #tpu.core_type<tc>, window_params = [{transform_indices = @transform_0, window_bounds = array<i64: 200, 8>}, {pipeline_mode = #tpu.pipeline_mode<synchronous>, transform_indices = @transform_1, window_bounds = array<i64: 8, 256>}, {pipeline_mode = #tpu.pipeline_mode<synchronous>, transform_indices = @transform_2, window_bounds = array<i64: 256, 256>}, {pipeline_mode = #tpu.pipeline_mode<synchronous>, transform_indices = @transform_3, window_bounds = array<i64: 256, 256>}, {pipeline_mode = #tpu.pipeline_mode<synchronous>, transform_indices = @transform_4, window_bounds = array<i64: 256, 4>}, {pipeline_mode = #tpu.pipeline_mode<synchronous>, transform_indices = @transform_5, window_bounds = array<i64: 3, 256>}, {pipeline_mode = #tpu.pipeline_mode<synchronous>, transform_indices = @transform_6, window_bounds = array<i64: 3, 4>}, {transform_indices = @transform_7, window_bounds = array<i64: 200, 4>}]} {
    %c0 = arith.constant 0 : index
    %c0_0 = arith.constant 0 : index
    %0 = vector.load %arg1[%c0, %c0_0] : memref<200x8xf32, #tpu.memory_space<vmem>>, vector<200x8xf32>
    %c0_1 = arith.constant 0 : index
    %c0_2 = arith.constant 0 : index
    %1 = vector.load %arg6[%c0_1, %c0_2] : memref<3x256xf32, #tpu.memory_space<vmem>>, vector<3x256xf32>
    %c0_3 = arith.constant 0 : index
    %c0_4 = arith.constant 0 : index
    %2 = vector.load %arg7[%c0_3, %c0_4] : memref<3x4xf32, #tpu.memory_space<vmem>>, vector<3x4xf32>
    %c0_5 = arith.constant 0 : index
    %c0_6 = arith.constant 0 : index
    %3 = vector.load %arg2[%c0_5, %c0_6] : memref<8x256xf32, #tpu.memory_space<vmem>>, vector<8x256xf32>
    %cst = arith.constant dense<0.000000e+00> : vector<200x256xf32>
    %4 = tpu.matmul %0, %3, %cst {dimension_numbers = #tpu.dot_dimension_numbers<[1], [0], [0], [1], [0, 0, 1, 1], [], []>} : vector<200x8xf32>, vector<8x256xf32>, vector<200x256xf32> -> vector<200x256xf32>
    %5 = vector.extract_strided_slice %1 {offsets = [0, 0], sizes = [1, 256], strides = [1, 1]} : vector<3x256xf32> to vector<1x256xf32>
    %6 = vector.broadcast %5 : vector<1x256xf32> to vector<200x256xf32>
    %7 = arith.addf %4, %6 : vector<200x256xf32>
    %8 = arith.truncf %7 : vector<200x256xf32> to vector<200x256xbf16>
    %cst_7 = arith.constant 5.000000e-01 : bf16
    %9 = vector.broadcast %cst_7 : bf16 to vector<200x256xbf16>
    %10 = arith.mulf %9, %8 : vector<200x256xbf16>
    %cst_8 = arith.constant 4.467770e-02 : bf16
    %11 = vector.broadcast %cst_8 : bf16 to vector<200x256xbf16>
    %12 = arith.mulf %11, %8 : vector<200x256xbf16>
    %13 = arith.mulf %12, %8 : vector<200x256xbf16>
    %14 = arith.mulf %13, %8 : vector<200x256xbf16>
    %15 = arith.addf %8, %14 : vector<200x256xbf16>
    %cst_9 = arith.constant 7.968750e-01 : bf16
    %16 = vector.broadcast %cst_9 : bf16 to vector<200x256xbf16>
    %17 = arith.mulf %16, %15 : vector<200x256xbf16>
    %18 = math.tanh %17 : vector<200x256xbf16>
    %cst_10 = arith.constant 1.000000e+00 : bf16
    %19 = vector.broadcast %cst_10 : bf16 to vector<200x256xbf16>
    %20 = arith.addf %19, %18 : vector<200x256xbf16>
    %21 = arith.mulf %10, %20 : vector<200x256xbf16>
    %c0_11 = arith.constant 0 : index
    %c0_12 = arith.constant 0 : index
    %22 = vector.load %arg3[%c0_11, %c0_12] : memref<256x256xbf16, #tpu.memory_space<vmem>>, vector<256x256xbf16>
    %cst_13 = arith.constant dense<0.000000e+00> : vector<200x256xf32>
    %23 = tpu.matmul %21, %22, %cst_13 {dimension_numbers = #tpu.dot_dimension_numbers<[1], [0], [0], [1], [0, 0, 1, 1], [], []>} : vector<200x256xbf16>, vector<256x256xbf16>, vector<200x256xf32> -> vector<200x256xf32>
    %24 = vector.extract_strided_slice %1 {offsets = [1, 0], sizes = [1, 256], strides = [1, 1]} : vector<3x256xf32> to vector<1x256xf32>
    %25 = vector.broadcast %24 : vector<1x256xf32> to vector<200x256xf32>
    %26 = arith.addf %23, %25 : vector<200x256xf32>
    %27 = arith.truncf %26 : vector<200x256xf32> to vector<200x256xbf16>
    %cst_14 = arith.constant 5.000000e-01 : bf16
    %28 = vector.broadcast %cst_14 : bf16 to vector<200x256xbf16>
    %29 = arith.mulf %28, %27 : vector<200x256xbf16>
    %cst_15 = arith.constant 4.467770e-02 : bf16
    %30 = vector.broadcast %cst_15 : bf16 to vector<200x256xbf16>
    %31 = arith.mulf %30, %27 : vector<200x256xbf16>
    %32 = arith.mulf %31, %27 : vector<200x256xbf16>
    %33 = arith.mulf %32, %27 : vector<200x256xbf16>
    %34 = arith.addf %27, %33 : vector<200x256xbf16>
    %cst_16 = arith.constant 7.968750e-01 : bf16
    %35 = vector.broadcast %cst_16 : bf16 to vector<200x256xbf16>
    %36 = arith.mulf %35, %34 : vector<200x256xbf16>
    %37 = math.tanh %36 : vector<200x256xbf16>
    %cst_17 = arith.constant 1.000000e+00 : bf16
    %38 = vector.broadcast %cst_17 : bf16 to vector<200x256xbf16>
    %39 = arith.addf %38, %37 : vector<200x256xbf16>
    %40 = arith.mulf %29, %39 : vector<200x256xbf16>
    %c0_18 = arith.constant 0 : index
    %c0_19 = arith.constant 0 : index
    %41 = vector.load %arg4[%c0_18, %c0_19] : memref<256x256xbf16, #tpu.memory_space<vmem>>, vector<256x256xbf16>
    %cst_20 = arith.constant dense<0.000000e+00> : vector<200x256xf32>
    %42 = tpu.matmul %40, %41, %cst_20 {dimension_numbers = #tpu.dot_dimension_numbers<[1], [0], [0], [1], [0, 0, 1, 1], [], []>} : vector<200x256xbf16>, vector<256x256xbf16>, vector<200x256xf32> -> vector<200x256xf32>
    %43 = vector.extract_strided_slice %1 {offsets = [2, 0], sizes = [1, 256], strides = [1, 1]} : vector<3x256xf32> to vector<1x256xf32>
    %44 = vector.broadcast %43 : vector<1x256xf32> to vector<200x256xf32>
    %45 = arith.addf %42, %44 : vector<200x256xf32>
    %46 = arith.truncf %45 : vector<200x256xf32> to vector<200x256xbf16>
    %cst_21 = arith.constant 5.000000e-01 : bf16
    %47 = vector.broadcast %cst_21 : bf16 to vector<200x256xbf16>
    %48 = arith.mulf %47, %46 : vector<200x256xbf16>
    %cst_22 = arith.constant 4.467770e-02 : bf16
    %49 = vector.broadcast %cst_22 : bf16 to vector<200x256xbf16>
    %50 = arith.mulf %49, %46 : vector<200x256xbf16>
    %51 = arith.mulf %50, %46 : vector<200x256xbf16>
    %52 = arith.mulf %51, %46 : vector<200x256xbf16>
    %53 = arith.addf %46, %52 : vector<200x256xbf16>
    %cst_23 = arith.constant 7.968750e-01 : bf16
    %54 = vector.broadcast %cst_23 : bf16 to vector<200x256xbf16>
    %55 = arith.mulf %54, %53 : vector<200x256xbf16>
    %56 = math.tanh %55 : vector<200x256xbf16>
    %cst_24 = arith.constant 1.000000e+00 : bf16
    %57 = vector.broadcast %cst_24 : bf16 to vector<200x256xbf16>
    %58 = arith.addf %57, %56 : vector<200x256xbf16>
    %59 = arith.mulf %48, %58 : vector<200x256xbf16>
    %c0_25 = arith.constant 0 : index
    %c0_26 = arith.constant 0 : index
    %60 = vector.load %arg5[%c0_25, %c0_26] : memref<256x4xbf16, #tpu.memory_space<vmem>>, vector<256x4xbf16>
    %cst_27 = arith.constant dense<0.000000e+00> : vector<200x4xf32>
    %61 = tpu.matmul %59, %60, %cst_27 {dimension_numbers = #tpu.dot_dimension_numbers<[1], [0], [0], [1], [0, 0, 1, 1], [], []>} : vector<200x256xbf16>, vector<256x4xbf16>, vector<200x4xf32> -> vector<200x4xf32>
    %62 = vector.extract_strided_slice %2 {offsets = [0, 0], sizes = [1, 4], strides = [1, 1]} : vector<3x4xf32> to vector<1x4xf32>
    %63 = vector.broadcast %62 : vector<1x4xf32> to vector<200x4xf32>
    %64 = arith.addf %61, %63 : vector<200x4xf32>
    %65 = math.tanh %64 : vector<200x4xf32>
    %66 = vector.extract_strided_slice %2 {offsets = [1, 0], sizes = [1, 4], strides = [1, 1]} : vector<3x4xf32> to vector<1x4xf32>
    %67 = vector.broadcast %66 : vector<1x4xf32> to vector<200x4xf32>
    %68 = arith.mulf %65, %67 : vector<200x4xf32>
    %69 = vector.extract_strided_slice %2 {offsets = [2, 0], sizes = [1, 4], strides = [1, 1]} : vector<3x4xf32> to vector<1x4xf32>
    %70 = vector.broadcast %69 : vector<1x4xf32> to vector<200x4xf32>
    %71 = arith.addf %68, %70 : vector<200x4xf32>
    %c0_28 = arith.constant 0 : index
    %c0_29 = arith.constant 0 : index
    %72 = vector.load %arg8[%c0_28, %c0_29] : memref<200x4xf32, #tpu.memory_space<vmem>>, vector<200x4xf32>
    tpu.vector_store %arg8[%c0_28, %c0_29], %71 {strides = array<i32>} : memref<200x4xf32, #tpu.memory_space<vmem>>, vector<200x4xf32>,
    return
  }
  func.func @transform_0(%arg0: i32) -> (i32, i32) {
    %c0_i32 = arith.constant 0 : i32
    %c0_i32_0 = arith.constant 0 : i32
    return %arg0, %c0_i32 : i32, i32
  }
  func.func @transform_1(%arg0: i32) -> (i32, i32) {
    %c0_i32 = arith.constant 0 : i32
    %c0_i32_0 = arith.constant 0 : i32
    %c0_i32_1 = arith.constant 0 : i32
    return %c0_i32, %c0_i32_0 : i32, i32
  }
  func.func @transform_2(%arg0: i32) -> (i32, i32) {
    %c0_i32 = arith.constant 0 : i32
    %c0_i32_0 = arith.constant 0 : i32
    %c0_i32_1 = arith.constant 0 : i32
    return %c0_i32, %c0_i32_0 : i32, i32
  }
  func.func @transform_3(%arg0: i32) -> (i32, i32) {
    %c0_i32 = arith.constant 0 : i32
    %c0_i32_0 = arith.constant 0 : i32
    %c0_i32_1 = arith.constant 0 : i32
    return %c0_i32, %c0_i32_0 : i32, i32
  }
  func.func @transform_4(%arg0: i32) -> (i32, i32) {
    %c0_i32 = arith.constant 0 : i32
    %c0_i32_0 = arith.constant 0 : i32
    %c0_i32_1 = arith.constant 0 : i32
    return %c0_i32, %c0_i32_0 : i32, i32
  }
  func.func @transform_5(%arg0: i32) -> (i32, i32) {
    %c0_i32 = arith.constant 0 : i32
    %c0_i32_0 = arith.constant 0 : i32
    %c0_i32_1 = arith.constant 0 : i32
    return %c0_i32, %c0_i32_0 : i32, i32
  }
  func.func @transform_6(%arg0: i32) -> (i32, i32) {
    %c0_i32 = arith.constant 0 : i32
    %c0_i32_0 = arith.constant 0 : i32
    %c0_i32_1 = arith.constant 0 : i32
    return %c0_i32, %c0_i32_0 : i32, i32
  }
  func.func @transform_7(%arg0: i32) -> (i32, i32) {
    %c0_i32 = arith.constant 0 : i32
    %c0_i32_0 = arith.constant 0 : i32
    return %arg0, %c0_i32 : i32, i32
  }
}

</mosaic_0001>

<llo_original>
// kernel: _lambda_.1
$region0: #{_lambda_.1}
  #allocation0 [shape = 'u32[]', space=smem, size = 0x4, offset = 0x4, fixed_abs, tag = 'smem constant byte address 0x4 - core index']
  #allocation1 [shape = 'u32[144,128]{1,0:T(1,128)}', space=vmem, size = 0x12000, scoped, tag = 'internal scratch']
  %s0 = inlined_call_operand.vmem [shape: f32[200,8], index: 0, kind: input, shape index: {}]
  %s1 = inlined_call_operand.vmem [shape: f32[8,256], index: 1, kind: input, shape index: {}]
  %s2 = inlined_call_operand.vmem [shape: bf16[256,256], index: 2, kind: input, shape index: {}]
  %s3 = inlined_call_operand.vmem [shape: bf16[256,256], index: 3, kind: input, shape index: {}]
  %s4 = inlined_call_operand.vmem [shape: bf16[256,4], index: 4, kind: input, shape index: {}]
  %s5 = inlined_call_operand.vmem [shape: f32[3,256], index: 5, kind: input, shape index: {}]
  %s6 = inlined_call_operand.vmem [shape: f32[3,4], index: 6, kind: input, shape index: {}]
  %s7 = inlined_call_operand.vmem [shape: f32[200,4], index: 7, kind: output, shape index: {}]
  %s8 = sld [smem:[#allocation0]]
  $region38: #{_lambda_.1} parent=0
    _
  %s10 = ssub.s32 1, %s8
  %s11 = scalar_select 0, %s10, %s8
  // Predicated region
  $region2: #{_lambda_.1} parent=0 // pred_check
    _
  $region3: #{_lambda_.1} parent=0 // pred_check_branch
    %13 = sbr.rel (0) target = $region5
  $region4: #{_lambda_.1} parent=0 // pred_region
    _
  $region5: #{_lambda_.1} parent=0 // pred_fallthru
    _
  // Predicated region
  $region6: #{_lambda_.1} parent=0 // pred_check
    _
  $region7: #{_lambda_.1} parent=0 // pred_check_branch
    %15 = sbr.rel (0) target = $region9
  $region8: #{_lambda_.1} parent=0 // pred_region
    _
  $region9: #{_lambda_.1} parent=0 // pred_fallthru
    _
  // Predicated region
  $region10: #{_lambda_.1} parent=0 // pred_check
    _
  $region11: #{_lambda_.1} parent=0 // pred_check_branch
    %17 = sbr.rel (0) target = $region13
  $region12: #{_lambda_.1} parent=0 // pred_region
    _
  $region13: #{_lambda_.1} parent=0 // pred_fallthru
    _
  // Predicated region
  $region14: #{_lambda_.1} parent=0 // pred_check
    _
  $region15: #{_lambda_.1} parent=0 // pred_check_branch
    %19 = sbr.rel (0) target = $region17
  $region16: #{_lambda_.1} parent=0 // pred_region
    _
  $region17: #{_lambda_.1} parent=0 // pred_fallthru
    _
  // Predicated region
  $region18: #{_lambda_.1} parent=0 // pred_check
    _
  $region19: #{_lambda_.1} parent=0 // pred_check_branch
    %21 = sbr.rel (0) target = $region21
  $region20: #{_lambda_.1} parent=0 // pred_region
    _
  $region21: #{_lambda_.1} parent=0 // pred_fallthru
    _
  // Predicated region
  $region22: #{_lambda_.1} parent=0 // pred_check
    _
  $region23: #{_lambda_.1} parent=0 // pred_check_branch
    %23 = sbr.rel (0) target = $region25
  $region24: #{_lambda_.1} parent=0 // pred_region
    _
  $region25: #{_lambda_.1} parent=0 // pred_fallthru
    _
  // Predicated region
  $region26: #{_lambda_.1} parent=0 // pred_check
    _
  $region27: #{_lambda_.1} parent=0 // pred_check_branch
    %25 = sbr.rel (0) target = $region29
  $region28: #{_lambda_.1} parent=0 // pred_region
    _
  $region29: #{_lambda_.1} parent=0 // pred_fallthru
    _
  %v31 = vld [vmem:[%s0] sm:$0xff]
  %v32 = vld [vmem:[%s0 + $0x8] sm:$0xff]
  %v33 = vld [vmem:[%s0 + $0x10] sm:$0xff]
  %v34 = vld [vmem:[%s0 + $0x18] sm:$0xff]
  %v35 = vld [vmem:[%s0 + $0x20] sm:$0xff]
  %v36 = vld [vmem:[%s0 + $0x28] sm:$0xff]
  %v37 = vld [vmem:[%s0 + $0x30] sm:$0xff]
  %v38 = vld [vmem:[%s0 + $0x38] sm:$0xff]
  %v39 = vld [vmem:[%s0 + $0x40] sm:$0xff]
  %v40 = vld [vmem:[%s0 + $0x48] sm:$0xff]
  %v41 = vld [vmem:[%s0 + $0x50] sm:$0xff]
  %v42 = vld [vmem:[%s0 + $0x58] sm:$0xff]
  %v43 = vld [vmem:[%s0 + $0x60] sm:$0xff]
  %v44 = vld [vmem:[%s0 + $0x68] sm:$0xff]
  %v45 = vld [vmem:[%s0 + $0x70] sm:$0xff]
  %v46 = vld [vmem:[%s0 + $0x78] sm:$0xff]
  %v47 = vld [vmem:[%s0 + $0x80] sm:$0xff]
  %v48 = vld [vmem:[%s0 + $0x88] sm:$0xff]
  %v49 = vld [vmem:[%s0 + $0x90] sm:$0xff]
  %v50 = vld [vmem:[%s0 + $0x98] sm:$0xff]
  %v51 = vld [vmem:[%s0 + $0xa0] sm:$0xff]
  %v52 = vld [vmem:[%s0 + $0xa8] sm:$0xff]
  %v53 = vld [vmem:[%s0 + $0xb0] sm:$0xff]
  %v54 = vld [vmem:[%s0 + $0xb8] sm:$0xff]
  %v55 = vld [vmem:[%s0 + $0xc0] sm:$0xff]
  %v56 = vld [vmem:[%s5] sm:$0x77]
  %v57 = vld [vmem:[%s6] sm:$0x7]
  %v58 = vld [vmem:[%s1] sm:$0xff]
  %v59 = vld [vmem:[%s1 + $0x8] sm:$0xff]
  %v61 = vlaneseq
  %v62 = vshrl.u32 %v61, 7
  %v63 = vsub.s32 0, %v62
  %v64 = vrot.slane %v56, %v63
  %v65 = vlaneseq
  %v66 = vshrl.u32 %v65, 7
  %v67 = vsub.s32 4, %v66
  %v68 = vrot.slane %v56, %v67
  %v71 = vlaneseq
  %v72 = vshrl.u32 %v71, 7
  %v73 = vsub.s32 0, %v72
  %v74 = vrot.slane %v64, %v73
  %v75 = vlaneseq
  %v76 = vshrl.u32 %v75, 7
  %v77 = vsub.s32 0, %v76
  %v78 = vrot.slane %v68, %v77
  %vm79 = vcmask 64512
  %v81 = vsel %vm79, %v31, 0
  %v84 = vsel %vm79, %v32, 0
  %v87 = vsel %vm79, %v33, 0
  %v90 = vsel %vm79, %v34, 0
  %v93 = vsel %vm79, %v35, 0
  %v96 = vsel %vm79, %v36, 0
  %v99 = vsel %vm79, %v37, 0
  %v102 = vsel %vm79, %v38, 0
  %v105 = vsel %vm79, %v39, 0
  %v108 = vsel %vm79, %v40, 0
  %v111 = vsel %vm79, %v41, 0
  %v114 = vsel %vm79, %v42, 0
  %v117 = vsel %vm79, %v43, 0
  %v120 = vsel %vm79, %v44, 0
  %v123 = vsel %vm79, %v45, 0
  %v126 = vsel %vm79, %v46, 0
  %v129 = vsel %vm79, %v47, 0
  %v132 = vsel %vm79, %v48, 0
  %v135 = vsel %vm79, %v49, 0
  %v138 = vsel %vm79, %v50, 0
  %v141 = vsel %vm79, %v51, 0
  %v144 = vsel %vm79, %v52, 0
  %v147 = vsel %vm79, %v53, 0
  %v150 = vsel %vm79, %v54, 0
  %v153 = vsel %vm79, %v55, 0
  %155 = vmatprep.subr.mxu0 %v59
  %156 = vmatpush1.msra.mxu0 %v58
  %157 = vmatprep.subr.mxu0 0.0
  %158 = vmatpush1.msra.mxu0 0.0
  %159 = vmatprep.subr.mxu0 0.0
  %160 = vmatpush1.msra.mxu0 0.0
  %161 = vmatprep.subr.mxu0 0.0
  %162 = vmatpush1.msra.mxu0 0.0
  %163 = vmatprep.subr.mxu0 0.0
  %164 = vmatpush1.msra.mxu0 0.0
  %165 = vmatprep.subr.mxu0 0.0
  %166 = vmatpush1.msra.mxu0 0.0
  %167 = vmatprep.subr.mxu0 0.0
  %168 = vmatpush1.msra.mxu0 0.0
  %169 = vmatprep.subr.mxu0 0.0
  %170 = vmatpush1.msra.mxu0 0.0
  %171 = vmatprep.subr.mxu0 0.0
  %172 = vmatpush1.msra.mxu0 0.0
  %173 = vmatprep.subr.mxu0 0.0
  %174 = vmatpush1.msra.mxu0 0.0
  %175 = vmatprep.subr.mxu0 0.0
  %176 = vmatpush1.msra.mxu0 0.0
  %177 = vmatprep.subr.mxu0 0.0
  %178 = vmatpush1.msra.mxu0 0.0
  %179 = vmatprep.subr.mxu0 0.0
  %180 = vmatpush1.msra.mxu0 0.0
  %181 = vmatprep.subr.mxu0 0.0
  %182 = vmatpush1.msra.mxu0 0.0
  %183 = vmatprep.subr.mxu0 0.0
  %184 = vmatpush1.msra.mxu0 0.0
  %185 = vmatprep.subr.mxu0 0.0
  %186 = vmatpush1.msra.mxu0 0.0
  %187 = vmatprep.subr.mxu0 0.0
  %188 = vmatpush1.msra.mxu0 0.0
  %189 = vmatprep.subr.mxu0 0.0
  %190 = vmatpush1.msra.mxu0 0.0
  %191 = vmatprep.subr.mxu0 0.0
  %192 = vmatpush1.msra.mxu0 0.0
  %193 = vmatprep.subr.mxu0 0.0
  %194 = vmatpush1.msra.mxu0 0.0
  %195 = vmatprep.subr.mxu0 0.0
  %196 = vmatpush1.msra.mxu0 0.0
  %197 = vmatprep.subr.mxu0 0.0
  %198 = vmatpush1.msra.mxu0 0.0
  %199 = vmatprep.subr.mxu0 0.0
  %200 = vmatpush1.msra.mxu0 0.0
  %201 = vmatprep.subr.mxu0 0.0
  %202 = vmatpush1.msra.mxu0 0.0
  %203 = vmatprep.subr.mxu0 0.0
  %204 = vmatpush1.msra.mxu0 0.0
  %205 = vmatprep.subr.mxu0 0.0
  %206 = vmatpush1.msra.mxu0 0.0
  %207 = vmatprep.subr.mxu0 0.0
  %208 = vmatpush1.msra.mxu0 0.0
  %209 = vmatprep.subr.mxu0 0.0
  %210 = vmatpush1.msra.mxu0 0.0
  %211 = vmatprep.subr.mxu0 0.0
  %212 = vmatpush1.msra.mxu0 0.0
  %213 = vmatprep.subr.mxu0 0.0
  %214 = vmatpush1.msra.mxu0 0.0
  %215 = vmatprep.subr.mxu0 0.0
  %216 = vmatpush1.msra.mxu0 0.0
  %217 = vmatprep.subr.mxu0 0.0
  %218 = vmatpush1.msra.mxu0 0.0
  %219 = vmatprep.mubr.f32.mxu0 0.0
  %220 = vmatmul.mubr.f32.gmra.mrb[0].mxu0 %v81
  %v221 = vpop.f32.mrb[0].mxu0
  %v222 = vadd.f32 %v74, %v221
  %v223 = vpop.f32.mrb[0].mxu0
  %v224 = vadd.f32 %v78, %v223
  %225 = vmatprep.mubr.f32.mxu0 0.0
  %226 = vmatmul.mubr.f32.gmra.mrb[0].mxu0 %v84
  %v227 = vpop.f32.mrb[0].mxu0
  %v228 = vadd.f32 %v74, %v227
  %v229 = vpop.f32.mrb[0].mxu0
  %v230 = vadd.f32 %v78, %v229
  %231 = vmatprep.mubr.f32.mxu0 0.0
  %232 = vmatmul.mubr.f32.gmra.mrb[0].mxu0 %v87
  %v233 = vpop.f32.mrb[0].mxu0
  %v234 = vadd.f32 %v74, %v233
  %v235 = vpop.f32.mrb[0].mxu0
  %v236 = vadd.f32 %v78, %v235
  %237 = vmatprep.mubr.f32.mxu0 0.0
  %238 = vmatmul.mubr.f32.gmra.mrb[0].mxu0 %v90
  %v239 = vpop.f32.mrb[0].mxu0
  %v240 = vadd.f32 %v74, %v239
  %v241 = vpop.f32.mrb[0].mxu0
  %v242 = vadd.f32 %v78, %v241
  %243 = vmatprep.mubr.f32.mxu0 0.0
  %244 = vmatmul.mubr.f32.gmra.mrb[0].mxu0 %v93
  %v245 = vpop.f32.mrb[0].mxu0
  %v246 = vadd.f32 %v74, %v245
  %v247 = vpop.f32.mrb[0].mxu0
  %v248 = vadd.f32 %v78, %v247
  %249 = vmatprep.mubr.f32.mxu0 0.0
  %250 = vmatmul.mubr.f32.gmra.mrb[0].mxu0 %v96
  %v251 = vpop.f32.mrb[0].mxu0
  %v252 = vadd.f32 %v74, %v251
  %v253 = vpop.f32.mrb[0].mxu0
  %v254 = vadd.f32 %v78, %v253
  %255 = vmatprep.mubr.f32.mxu0 0.0
  %256 = vmatmul.mubr.f32.gmra.mrb[0].mxu0 %v99
  %v257 = vpop.f32.mrb[0].mxu0
  %v258 = vadd.f32 %v74, %v257
  %v259 = vpop.f32.mrb[0].mxu0
  %v260 = vadd.f32 %v78, %v259
  %261 = vmatprep.mubr.f32.mxu0 0.0
  %262 = vmatmul.mubr.f32.gmra.mrb[0].mxu0 %v102
  %v263 = vpop.f32.mrb[0].mxu0
  %v264 = vadd.f32 %v74, %v263
  %v265 = vpop.f32.mrb[0].mxu0
  %v266 = vadd.f32 %v78, %v265
  %267 = vmatprep.mubr.f32.mxu0 0.0
  %268 = vmatmul.mubr.f32.gmra.mrb[0].mxu0 %v105
  %v269 = vpop.f32.mrb[0].mxu0
  %v270 = vadd.f32 %v74, %v269
  %v271 = vpop.f32.mrb[0].mxu0
  %v272 = vadd.f32 %v78, %v271
  %273 = vmatprep.mubr.f32.mxu0 0.0
  %274 = vmatmul.mubr.f32.gmra.mrb[0].mxu0 %v108
  %v275 = vpop.f32.mrb[0].mxu0
  %v276 = vadd.f32 %v74, %v275
  %v277 = vpop.f32.mrb[0].mxu0
  %v278 = vadd.f32 %v78, %v277
  %279 = vmatprep.mubr.f32.mxu0 0.0
  %280 = vmatmul.mubr.f32.gmra.mrb[0].mxu0 %v111
  %v281 = vpop.f32.mrb[0].mxu0
  %v282 = vadd.f32 %v74, %v281
  %v283 = vpop.f32.mrb[0].mxu0
  %v284 = vadd.f32 %v78, %v283
  %285 = vmatprep.mubr.f32.mxu0 0.0
  %286 = vmatmul.mubr.f32.gmra.mrb[0].mxu0 %v114
  %v287 = vpop.f32.mrb[0].mxu0
  %v288 = vadd.f32 %v74, %v287
  %v289 = vpop.f32.mrb[0].mxu0
  %v290 = vadd.f32 %v78, %v289
  %291 = vmatprep.mubr.f32.mxu0 0.0
  %292 = vmatmul.mubr.f32.gmra.mrb[0].mxu0 %v117
  %v293 = vpop.f32.mrb[0].mxu0
  %v294 = vadd.f32 %v74, %v293
  %v295 = vpop.f32.mrb[0].mxu0
  %v296 = vadd.f32 %v78, %v295
  %297 = vmatprep.mubr.f32.mxu0 0.0
  %298 = vmatmul.mubr.f32.gmra.mrb[0].mxu0 %v120
  %v299 = vpop.f32.mrb[0].mxu0
  %v300 = vadd.f32 %v74, %v299
  %v301 = vpop.f32.mrb[0].mxu0
  %v302 = vadd.f32 %v78, %v301
  %303 = vmatprep.mubr.f32.mxu0 0.0
  %304 = vmatmul.mubr.f32.gmra.mrb[0].mxu0 %v123
  %v305 = vpop.f32.mrb[0].mxu0
  %v306 = vadd.f32 %v74, %v305
  %v307 = vpop.f32.mrb[0].mxu0
  %v308 = vadd.f32 %v78, %v307
  %309 = vmatprep.mubr.f32.mxu0 0.0
  %310 = vmatmul.mubr.f32.gmra.mrb[0].mxu0 %v126
  %v311 = vpop.f32.mrb[0].mxu0
  %v312 = vadd.f32 %v74, %v311
  %v313 = vpop.f32.mrb[0].mxu0
  %v314 = vadd.f32 %v78, %v313
  %315 = vmatprep.mubr.f32.mxu0 0.0
  %316 = vmatmul.mubr.f32.gmra.mrb[0].mxu0 %v129
  %v317 = vpop.f32.mrb[0].mxu0
  %v318 = vadd.f32 %v74, %v317
  %v319 = vpop.f32.mrb[0].mxu0
  %v320 = vadd.f32 %v78, %v319
  %321 = vmatprep.mubr.f32.mxu0 0.0
  %322 = vmatmul.mubr.f32.gmra.mrb[0].mxu0 %v132
  %v323 = vpop.f32.mrb[0].mxu0
  %v324 = vadd.f32 %v74, %v323
  %v325 = vpop.f32.mrb[0].mxu0
  %v326 = vadd.f32 %v78, %v325
  %327 = vmatprep.mubr.f32.mxu0 0.0
  %328 = vmatmul.mubr.f32.gmra.mrb[0].mxu0 %v135
  %v329 = vpop.f32.mrb[0].mxu0
  %v330 = vadd.f32 %v74, %v329
  %v331 = vpop.f32.mrb[0].mxu0
  %v332 = vadd.f32 %v78, %v331
  %333 = vmatprep.mubr.f32.mxu0 0.0
  %334 = vmatmul.mubr.f32.gmra.mrb[0].mxu0 %v138
  %v335 = vpop.f32.mrb[0].mxu0
  %v336 = vadd.f32 %v74, %v335
  %v337 = vpop.f32.mrb[0].mxu0
  %v338 = vadd.f32 %v78, %v337
  %339 = vmatprep.mubr.f32.mxu0 0.0
  %340 = vmatmul.mubr.f32.gmra.mrb[0].mxu0 %v141
  %v341 = vpop.f32.mrb[0].mxu0
  %v342 = vadd.f32 %v74, %v341
  %v343 = vpop.f32.mrb[0].mxu0
  %v344 = vadd.f32 %v78, %v343
  %345 = vmatprep.mubr.f32.mxu0 0.0
  %346 = vmatmul.mubr.f32.gmra.mrb[0].mxu0 %v144
  %v347 = vpop.f32.mrb[0].mxu0
  %v348 = vadd.f32 %v74, %v347
  %v349 = vpop.f32.mrb[0].mxu0
  %v350 = vadd.f32 %v78, %v349
  %351 = vmatprep.mubr.f32.mxu0 0.0
  %352 = vmatmul.mubr.f32.gmra.mrb[0].mxu0 %v147
  %v353 = vpop.f32.mrb[0].mxu0
  %v354 = vadd.f32 %v74, %v353
  %v355 = vpop.f32.mrb[0].mxu0
  %v356 = vadd.f32 %v78, %v355
  %357 = vmatprep.mubr.f32.mxu0 0.0
  %358 = vmatmul.mubr.f32.gmra.mrb[0].mxu0 %v150
  %v359 = vpop.f32.mrb[0].mxu0
  %v360 = vadd.f32 %v74, %v359
  %v361 = vpop.f32.mrb[0].mxu0
  %v362 = vadd.f32 %v78, %v361
  %363 = vmatprep.mubr.f32.mxu0 0.0
  %364 = vmatmul.mubr.f32.gmra.mrb[0].mxu0 %v153
  %v365 = vpop.f32.mrb[0].mxu0
  %v366 = vadd.f32 %v74, %v365
  %v367 = vpop.f32.mrb[0].mxu0
  %v368 = vadd.f32 %v78, %v367
  %369 = vdwg.mxu0
  %v370 = vpack.c.bf16 %v228, %v222
  %v371 = vpack.c.bf16 %v230, %v224
  %v372 = vpack.c.bf16 %v240, %v234
  %v373 = vpack.c.bf16 %v242, %v236
  %v374 = vpack.c.bf16 %v252, %v246
  %v375 = vpack.c.bf16 %v254, %v248
  %v376 = vpack.c.bf16 %v264, %v258
  %v377 = vpack.c.bf16 %v266, %v260
  %v378 = vpack.c.bf16 %v276, %v270
  %v379 = vpack.c.bf16 %v278, %v272
  %v380 = vpack.c.bf16 %v288, %v282
  %v381 = vpack.c.bf16 %v290, %v284
  %v382 = vpack.c.bf16 %v300, %v294
  %v383 = vpack.c.bf16 %v302, %v296
  %v384 = vpack.c.bf16 %v312, %v306
  %v385 = vpack.c.bf16 %v314, %v308
  %v386 = vpack.c.bf16 %v324, %v318
  %v387 = vpack.c.bf16 %v326, %v320
  %v388 = vpack.c.bf16 %v336, %v330
  %v389 = vpack.c.bf16 %v338, %v332
  %v390 = vpack.c.bf16 %v348, %v342
  %v391 = vpack.c.bf16 %v350, %v344
  %v392 = vpack.c.bf16 %v360, %v354
  %v393 = vpack.c.bf16 %v362, %v356
  %v394 = vpack.c.bf16 %v366, %v366
  %v395 = vpack.c.bf16 %v368, %v368
  %v396 = vmul.bf16 %v370, 1056980736
  %v397 = vmul.bf16 %v371, 1056980736
  %v398 = vmul.bf16 %v372, 1056980736
  %v399 = vmul.bf16 %v373, 1056980736
  %v400 = vmul.bf16 %v374, 1056980736
  %v401 = vmul.bf16 %v375, 1056980736
  %v402 = vmul.bf16 %v376, 1056980736
  %v403 = vmul.bf16 %v377, 1056980736
  %v404 = vmul.bf16 %v378, 1056980736
  %v405 = vmul.bf16 %v379, 1056980736
  %v406 = vmul.bf16 %v380, 1056980736
  %v407 = vmul.bf16 %v381, 1056980736
  %v408 = vmul.bf16 %v382, 1056980736
  %v409 = vmul.bf16 %v383, 1056980736
  %v410 = vmul.bf16 %v384, 1056980736
  %v411 = vmul.bf16 %v385, 1056980736
  %v412 = vmul.bf16 %v386, 1056980736
  %v413 = vmul.bf16 %v387, 1056980736
  %v414 = vmul.bf16 %v388, 1056980736
  %v415 = vmul.bf16 %v389, 1056980736
  %v416 = vmul.bf16 %v390, 1056980736
  %v417 = vmul.bf16 %v391, 1056980736
  %v418 = vmul.bf16 %v392, 1056980736
  %v419 = vmul.bf16 %v393, 1056980736
  %v420 = vmul.bf16 %v394, 1056980736
  %v421 = vmul.bf16 %v395, 1056980736
  %v422 = vmul.bf16 %v370, 1027030327
  %v423 = vmul.bf16 %v371, 1027030327
  %v424 = vmul.bf16 %v372, 1027030327
  %v425 = vmul.bf16 %v373, 1027030327
  %v426 = vmul.bf16 %v374, 1027030327
  %v427 = vmul.bf16 %v375, 1027030327
  %v428 = vmul.bf16 %v376, 1027030327
  %v429 = vmul.bf16 %v377, 1027030327
  %v430 = vmul.bf16 %v378, 1027030327
  %v431 = vmul.bf16 %v379, 1027030327
  %v432 = vmul.bf16 %v380, 1027030327
  %v433 = vmul.bf16 %v381, 1027030327
  %v434 = vmul.bf16 %v382, 1027030327
  %v435 = vmul.bf16 %v383, 1027030327
  %v436 = vmul.bf16 %v384, 1027030327
  %v437 = vmul.bf16 %v385, 1027030327
  %v438 = vmul.bf16 %v386, 1027030327
  %v439 = vmul.bf16 %v387, 1027030327
  %v440 = vmul.bf16 %v388, 1027030327
  %v441 = vmul.bf16 %v389, 1027030327
  %v442 = vmul.bf16 %v390, 1027030327
  %v443 = vmul.bf16 %v391, 1027030327
  %v444 = vmul.bf16 %v392, 1027030327
  %v445 = vmul.bf16 %v393, 1027030327
  %v446 = vmul.bf16 %v394, 1027030327
  %v447 = vmul.bf16 %v395, 1027030327
  %v448 = vmul.bf16 %v422, %v370
  %v449 = vmul.bf16 %v423, %v371
  %v450 = vmul.bf16 %v424, %v372
  %v451 = vmul.bf16 %v425, %v373
  %v452 = vmul.bf16 %v426, %v374
  %v453 = vmul.bf16 %v427, %v375
  %v454 = vmul.bf16 %v428, %v376
  %v455 = vmul.bf16 %v429, %v377
  %v456 = vmul.bf16 %v430, %v378
  %v457 = vmul.bf16 %v431, %v379
  %v458 = vmul.bf16 %v432, %v380
  %v459 = vmul.bf16 %v433, %v381
  %v460 = vmul.bf16 %v434, %v382
  %v461 = vmul.bf16 %v435, %v383
  %v462 = vmul.bf16 %v436, %v384
  %v463 = vmul.bf16 %v437, %v385
  %v464 = vmul.bf16 %v438, %v386
  %v465 = vmul.bf16 %v439, %v387
  %v466 = vmul.bf16 %v440, %v388
  %v467 = vmul.bf16 %v441, %v389
  %v468 = vmul.bf16 %v442, %v390
  %v469 = vmul.bf16 %v443, %v391
  %v470 = vmul.bf16 %v444, %v392
  %v471 = vmul.bf16 %v445, %v393
  %v472 = vmul.bf16 %v446, %v394
  %v473 = vmul.bf16 %v447, %v395
  %v474 = vmul.bf16 %v448, %v370
  %v475 = vmul.bf16 %v449, %v371
  %v476 = vmul.bf16 %v450, %v372
  %v477 = vmul.bf16 %v451, %v373
  %v478 = vmul.bf16 %v452, %v374
  %v479 = vmul.bf16 %v453, %v375
  %v480 = vmul.bf16 %v454, %v376
  %v481 = vmul.bf16 %v455, %v377
  %v482 = vmul.bf16 %v456, %v378
  %v483 = vmul.bf16 %v457, %v379
  %v484 = vmul.bf16 %v458, %v380
  %v485 = vmul.bf16 %v459, %v381
  %v486 = vmul.bf16 %v460, %v382
  %v487 = vmul.bf16 %v461, %v383
  %v488 = vmul.bf16 %v462, %v384
  %v489 = vmul.bf16 %v463, %v385
  %v490 = vmul.bf16 %v464, %v386
  %v491 = vmul.bf16 %v465, %v387
  %v492 = vmul.bf16 %v466, %v388
  %v493 = vmul.bf16 %v467, %v389
  %v494 = vmul.bf16 %v468, %v390
  %v495 = vmul.bf16 %v469, %v391
  %v496 = vmul.bf16 %v470, %v392
  %v497 = vmul.bf16 %v471, %v393
  %v498 = vmul.bf16 %v472, %v394
  %v499 = vmul.bf16 %v473, %v395
  %v500 = vadd.bf16 %v370, %v474
  %v501 = vadd.bf16 %v371, %v475
  %v502 = vadd.bf16 %v372, %v476
  %v503 = vadd.bf16 %v373, %v477
  %v504 = vadd.bf16 %v374, %v478
  %v505 = vadd.bf16 %v375, %v479
  %v506 = vadd.bf16 %v376, %v480
  %v507 = vadd.bf16 %v377, %v481
  %v508 = vadd.bf16 %v378, %v482
  %v509 = vadd.bf16 %v379, %v483
  %v510 = vadd.bf16 %v380, %v484
  %v511 = vadd.bf16 %v381, %v485
  %v512 = vadd.bf16 %v382, %v486
  %v513 = vadd.bf16 %v383, %v487
  %v514 = vadd.bf16 %v384, %v488
  %v515 = vadd.bf16 %v385, %v489
  %v516 = vadd.bf16 %v386, %v490
  %v517 = vadd.bf16 %v387, %v491
  %v518 = vadd.bf16 %v388, %v492
  %v519 = vadd.bf16 %v389, %v493
  %v520 = vadd.bf16 %v390, %v494
  %v521 = vadd.bf16 %v391, %v495
  %v522 = vadd.bf16 %v392, %v496
  %v523 = vadd.bf16 %v393, %v497
  %v524 = vadd.bf16 %v394, %v498
  %v525 = vadd.bf16 %v395, %v499
  %v526 = vmul.bf16 %v500, 1061961548
  %v527 = vmul.bf16 %v501, 1061961548
  %v528 = vmul.bf16 %v502, 1061961548
  %v529 = vmul.bf16 %v503, 1061961548
  %v530 = vmul.bf16 %v504, 1061961548
  %v531 = vmul.bf16 %v505, 1061961548
  %v532 = vmul.bf16 %v506, 1061961548
  %v533 = vmul.bf16 %v507, 1061961548
  %v534 = vmul.bf16 %v508, 1061961548
  %v535 = vmul.bf16 %v509, 1061961548
  %v536 = vmul.bf16 %v510, 1061961548
  %v537 = vmul.bf16 %v511, 1061961548
  %v538 = vmul.bf16 %v512, 1061961548
  %v539 = vmul.bf16 %v513, 1061961548
  %v540 = vmul.bf16 %v514, 1061961548
  %v541 = vmul.bf16 %v515, 1061961548
  %v542 = vmul.bf16 %v516, 1061961548
  %v543 = vmul.bf16 %v517, 1061961548
  %v544 = vmul.bf16 %v518, 1061961548
  %v545 = vmul.bf16 %v519, 1061961548
  %v546 = vmul.bf16 %v520, 1061961548
  %v547 = vmul.bf16 %v521, 1061961548
  %v548 = vmul.bf16 %v522, 1061961548
  %v549 = vmul.bf16 %v523, 1061961548
  %v550 = vmul.bf16 %v524, 1061961548
  %v551 = vmul.bf16 %v525, 1061961548
  %v552 = vtanh.bf16.pop %v526
  %v553 = vtanh.bf16.pop %v527
  %v554 = vtanh.bf16.pop %v528
  %v555 = vtanh.bf16.pop %v529
  %v556 = vtanh.bf16.pop %v530
  %v557 = vtanh.bf16.pop %v531
  %v558 = vtanh.bf16.pop %v532
  %v559 = vtanh.bf16.pop %v533
  %v560 = vtanh.bf16.pop %v534
  %v561 = vtanh.bf16.pop %v535
  %v562 = vtanh.bf16.pop %v536
  %v563 = vtanh.bf16.pop %v537
  %v564 = vtanh.bf16.pop %v538
  %v565 = vtanh.bf16.pop %v539
  %v566 = vtanh.bf16.pop %v540
  %v567 = vtanh.bf16.pop %v541
  %v568 = vtanh.bf16.pop %v542
  %v569 = vtanh.bf16.pop %v543
  %v570 = vtanh.bf16.pop %v544
  %v571 = vtanh.bf16.pop %v545
  %v572 = vtanh.bf16.pop %v546
  %v573 = vtanh.bf16.pop %v547
  %v574 = vtanh.bf16.pop %v548
  %v575 = vtanh.bf16.pop %v549
  %v576 = vtanh.bf16.pop %v550
  %v577 = vtanh.bf16.pop %v551
  %v578 = vadd.bf16 %v552, 1065369472
  %v579 = vadd.bf16 %v553, 1065369472
  %v580 = vadd.bf16 %v554, 1065369472
  %v581 = vadd.bf16 %v555, 1065369472
  %v582 = vadd.bf16 %v556, 1065369472
  %v583 = vadd.bf16 %v557, 1065369472
  %v584 = vadd.bf16 %v558, 1065369472
  %v585 = vadd.bf16 %v559, 1065369472
  %v586 = vadd.bf16 %v560, 1065369472
  %v587 = vadd.bf16 %v561, 1065369472
  %v588 = vadd.bf16 %v562, 1065369472
  %v589 = vadd.bf16 %v563, 1065369472
  %v590 = vadd.bf16 %v564, 1065369472
  %v591 = vadd.bf16 %v565, 1065369472
  %v592 = vadd.bf16 %v566, 1065369472
  %v593 = vadd.bf16 %v567, 1065369472
  %v594 = vadd.bf16 %v568, 1065369472
  %v595 = vadd.bf16 %v569, 1065369472
  %v596 = vadd.bf16 %v570, 1065369472
  %v597 = vadd.bf16 %v571, 1065369472
  %v598 = vadd.bf16 %v572, 1065369472
  %v599 = vadd.bf16 %v573, 1065369472
  %v600 = vadd.bf16 %v574, 1065369472
  %v601 = vadd.bf16 %v575, 1065369472
  %v602 = vadd.bf16 %v576, 1065369472
  %v603 = vadd.bf16 %v577, 1065369472
  %v604 = vmul.bf16 %v396, %v578
  %v605 = vmul.bf16 %v397, %v579
  %v606 = vmul.bf16 %v398, %v580
  %v607 = vmul.bf16 %v399, %v581
  %v608 = vmul.bf16 %v400, %v582
  %v609 = vmul.bf16 %v401, %v583
  %v610 = vmul.bf16 %v402, %v584
  %v611 = vmul.bf16 %v403, %v585
  %v612 = vmul.bf16 %v404, %v586
  %v613 = vmul.bf16 %v405, %v587
  %v614 = vmul.bf16 %v406, %v588
  %v615 = vmul.bf16 %v407, %v589
  %v616 = vmul.bf16 %v408, %v590
  %v617 = vmul.bf16 %v409, %v591
  %v618 = vmul.bf16 %v410, %v592
  %v619 = vmul.bf16 %v411, %v593
  %v620 = vmul.bf16 %v412, %v594
  %v621 = vmul.bf16 %v413, %v595
  %v622 = vmul.bf16 %v414, %v596
  %v623 = vmul.bf16 %v415, %v597
  %v624 = vmul.bf16 %v416, %v598
  %v625 = vmul.bf16 %v417, %v599
  %v626 = vmul.bf16 %v418, %v600
  %v627 = vmul.bf16 %v419, %v601
  %v628 = vmul.bf16 %v420, %v602
  %v629 = vmul.bf16 %v421, %v603
  %v630 = vld [vmem:[%s2] sm:$0xff]
  %v631 = vld [vmem:[%s2 + $0x8] sm:$0xff]
  %v632 = vld [vmem:[%s2 + $0x10] sm:$0xff]
  %v633 = vld [vmem:[%s2 + $0x18] sm:$0xff]
  %v634 = vld [vmem:[%s2 + $0x20] sm:$0xff]
  %v635 = vld [vmem:[%s2 + $0x28] sm:$0xff]
  %v636 = vld [vmem:[%s2 + $0x30] sm:$0xff]
  %v637 = vld [vmem:[%s2 + $0x38] sm:$0xff]
  %v638 = vld [vmem:[%s2 + $0x40] sm:$0xff]
  %v639 = vld [vmem:[%s2 + $0x48] sm:$0xff]
  %v640 = vld [vmem:[%s2 + $0x50] sm:$0xff]
  %v641 = vld [vmem:[%s2 + $0x58] sm:$0xff]
  %v642 = vld [vmem:[%s2 + $0x60] sm:$0xff]
  %v643 = vld [vmem:[%s2 + $0x68] sm:$0xff]
  %v644 = vld [vmem:[%s2 + $0x70] sm:$0xff]
  %v645 = vld [vmem:[%s2 + $0x78] sm:$0xff]
  %v646 = vld [vmem:[%s2 + $0x80] sm:$0xff]
  %v647 = vld [vmem:[%s2 + $0x88] sm:$0xff]
  %v648 = vld [vmem:[%s2 + $0x90] sm:$0xff]
  %v649 = vld [vmem:[%s2 + $0x98] sm:$0xff]
  %v650 = vld [vmem:[%s2 + $0xa0] sm:$0xff]
  %v651 = vld [vmem:[%s2 + $0xa8] sm:$0xff]
  %v652 = vld [vmem:[%s2 + $0xb0] sm:$0xff]
  %v653 = vld [vmem:[%s2 + $0xb8] sm:$0xff]
  %v654 = vld [vmem:[%s2 + $0xc0] sm:$0xff]
  %v655 = vld [vmem:[%s2 + $0xc8] sm:$0xff]
  %v656 = vld [vmem:[%s2 + $0xd0] sm:$0xff]
  %v657 = vld [vmem:[%s2 + $0xd8] sm:$0xff]
  %v658 = vld [vmem:[%s2 + $0xe0] sm:$0xff]
  %v659 = vld [vmem:[%s2 + $0xe8] sm:$0xff]
  %v660 = vld [vmem:[%s2 + $0xf0] sm:$0xff]
  %v661 = vld [vmem:[%s2 + $0xf8] sm:$0xff]
  %v662 = vlaneseq
  %v663 = vshrl.u32 %v662, 7
  %v664 = vsub.s32 1, %v663
  %v665 = vrot.slane %v56, %v664
  %v666 = vlaneseq
  %v667 = vshrl.u32 %v666, 7
  %v668 = vsub.s32 5, %v667
  %v669 = vrot.slane %v56, %v668
  %v672 = vlaneseq
  %v673 = vshrl.u32 %v672, 7
  %v674 = vsub.s32 1, %v673
  %v675 = vrot.slane %v665, %v674
  %v676 = vlaneseq
  %v677 = vshrl.u32 %v676, 7
  %v678 = vsub.s32 1, %v677
  %v679 = vrot.slane %v669, %v678
  %v712 = vunpack.c.l.b16 %v630
  %v713 = vunpack.c.h.b16 %v630
  %v714 = vunpack.c.l.b16 %v631
  %v715 = vunpack.c.h.b16 %v631
  %v716 = vunpack.c.l.b16 %v632
  %v717 = vunpack.c.h.b16 %v632
  %v718 = vunpack.c.l.b16 %v633
  %v719 = vunpack.c.h.b16 %v633
  %v720 = vunpack.c.l.b16 %v634
  %v721 = vunpack.c.h.b16 %v634
  %v722 = vunpack.c.l.b16 %v635
  %v723 = vunpack.c.h.b16 %v635
  %v724 = vunpack.c.l.b16 %v636
  %v725 = vunpack.c.h.b16 %v636
  %v726 = vunpack.c.l.b16 %v637
  %v727 = vunpack.c.h.b16 %v637
  %v728 = vunpack.c.l.b16 %v638
  %v729 = vunpack.c.h.b16 %v638
  %v730 = vunpack.c.l.b16 %v639
  %v731 = vunpack.c.h.b16 %v639
  %v732 = vunpack.c.l.b16 %v640
  %v733 = vunpack.c.h.b16 %v640
  %v734 = vunpack.c.l.b16 %v641
  %v735 = vunpack.c.h.b16 %v641
  %v736 = vunpack.c.l.b16 %v642
  %v737 = vunpack.c.h.b16 %v642
  %v738 = vunpack.c.l.b16 %v643
  %v739 = vunpack.c.h.b16 %v643
  %v740 = vunpack.c.l.b16 %v644
  %v741 = vunpack.c.h.b16 %v644
  %v742 = vunpack.c.l.b16 %v645
  %v743 = vunpack.c.h.b16 %v645
  %v744 = vunpack.c.l.b16 %v646
  %v745 = vunpack.c.h.b16 %v646
  %v746 = vunpack.c.l.b16 %v647
  %v747 = vunpack.c.h.b16 %v647
  %v748 = vunpack.c.l.b16 %v648
  %v749 = vunpack.c.h.b16 %v648
  %v750 = vunpack.c.l.b16 %v649
  %v751 = vunpack.c.h.b16 %v649
  %v752 = vunpack.c.l.b16 %v650
  %v753 = vunpack.c.h.b16 %v650
  %v754 = vunpack.c.l.b16 %v651
  %v755 = vunpack.c.h.b16 %v651
  %v756 = vunpack.c.l.b16 %v652
  %v757 = vunpack.c.h.b16 %v652
  %v758 = vunpack.c.l.b16 %v653
  %v759 = vunpack.c.h.b16 %v653
  %v760 = vunpack.c.l.b16 %v654
  %v761 = vunpack.c.h.b16 %v654
  %v762 = vunpack.c.l.b16 %v655
  %v763 = vunpack.c.h.b16 %v655
  %v764 = vunpack.c.l.b16 %v656
  %v765 = vunpack.c.h.b16 %v656
  %v766 = vunpack.c.l.b16 %v657
  %v767 = vunpack.c.h.b16 %v657
  %v768 = vunpack.c.l.b16 %v658
  %v769 = vunpack.c.h.b16 %v658
  %v770 = vunpack.c.l.b16 %v659
  %v771 = vunpack.c.h.b16 %v659
  %v772 = vunpack.c.l.b16 %v660
  %v773 = vunpack.c.h.b16 %v660
  %v774 = vunpack.c.l.b16 %v661
  %v775 = vunpack.c.h.b16 %v661
  %v776 = vpack.c.b16 %v714, %v712
  %v777 = vpack.c.b16 %v715, %v713
  %v778 = vpack.c.b16 %v718, %v716
  %v779 = vpack.c.b16 %v719, %v717
  %v780 = vpack.c.b16 %v722, %v720
  %v781 = vpack.c.b16 %v723, %v721
  %v782 = vpack.c.b16 %v726, %v724
  %v783 = vpack.c.b16 %v727, %v725
  %v784 = vpack.c.b16 %v730, %v728
  %v785 = vpack.c.b16 %v731, %v729
  %v786 = vpack.c.b16 %v734, %v732
  %v787 = vpack.c.b16 %v735, %v733
  %v788 = vpack.c.b16 %v738, %v736
  %v789 = vpack.c.b16 %v739, %v737
  %v790 = vpack.c.b16 %v742, %v740
  %v791 = vpack.c.b16 %v743, %v741
  %v792 = vpack.c.b16 %v746, %v744
  %v793 = vpack.c.b16 %v747, %v745
  %v794 = vpack.c.b16 %v750, %v748
  %v795 = vpack.c.b16 %v751, %v749
  %v796 = vpack.c.b16 %v754, %v752
  %v797 = vpack.c.b16 %v755, %v753
  %v798 = vpack.c.b16 %v758, %v756
  %v799 = vpack.c.b16 %v759, %v757
  %v800 = vpack.c.b16 %v762, %v760
  %v801 = vpack.c.b16 %v763, %v761
  %v802 = vpack.c.b16 %v766, %v764
  %v803 = vpack.c.b16 %v767, %v765
  %v804 = vpack.c.b16 %v770, %v768
  %v805 = vpack.c.b16 %v771, %v769
  %v806 = vpack.c.b16 %v774, %v772
  %v807 = vpack.c.b16 %v775, %v773
  %840 = vmatprep.subr.bf16.mxu0 %v777
  %841 = vmatpush1.bf16.msra.mxu0 %v776
  %842 = vmatprep.subr.bf16.mxu0 %v779
  %843 = vmatpush1.bf16.msra.mxu0 %v778
  %844 = vmatprep.subr.bf16.mxu0 %v781
  %845 = vmatpush1.bf16.msra.mxu0 %v780
  %846 = vmatprep.subr.bf16.mxu0 %v783
  %847 = vmatpush1.bf16.msra.mxu0 %v782
  %848 = vmatprep.subr.bf16.mxu0 %v785
  %849 = vmatpush1.bf16.msra.mxu0 %v784
  %850 = vmatprep.subr.bf16.mxu0 %v787
  %851 = vmatpush1.bf16.msra.mxu0 %v786
  %852 = vmatprep.subr.bf16.mxu0 %v789
  %853 = vmatpush1.bf16.msra.mxu0 %v788
  %854 = vmatprep.subr.bf16.mxu0 %v791
  %855 = vmatpush1.bf16.msra.mxu0 %v790
  %856 = vmatprep.subr.bf16.mxu0 %v793
  %857 = vmatpush1.bf16.msra.mxu0 %v792
  %858 = vmatprep.subr.bf16.mxu0 %v795
  %859 = vmatpush1.bf16.msra.mxu0 %v794
  %860 = vmatprep.subr.bf16.mxu0 %v797
  %861 = vmatpush1.bf16.msra.mxu0 %v796
  %862 = vmatprep.subr.bf16.mxu0 %v799
  %863 = vmatpush1.bf16.msra.mxu0 %v798
  %864 = vmatprep.subr.bf16.mxu0 %v801
  %865 = vmatpush1.bf16.msra.mxu0 %v800
  %866 = vmatprep.subr.bf16.mxu0 %v803
  %867 = vmatpush1.bf16.msra.mxu0 %v802
  %868 = vmatprep.subr.bf16.mxu0 %v805
  %869 = vmatpush1.bf16.msra.mxu0 %v804
  %870 = vmatprep.subr.bf16.mxu0 %v807
  %871 = vmatpush1.bf16.msra.mxu0 %v806
  %872 = vmatprep.mubr.bf16.mxu0 %v605
  %873 = vmatmul.mubr.bf16.gmra.mrb[0].mxu0 %v604
  %v874 = vpop.f32.mrb[0].mxu0
  %v875 = vadd.f32 %v675, %v874
  %v876 = vpop.f32.mrb[0].mxu0
  %v877 = vadd.f32 %v679, %v876
  %v878 = vpop.f32.mrb[0].mxu0
  %v879 = vadd.f32 %v675, %v878
  %v880 = vpop.f32.mrb[0].mxu0
  %v881 = vadd.f32 %v679, %v880
  %882 = vmatprep.mubr.bf16.mxu0 %v607
  %883 = vmatmul.mubr.bf16.gmra.mrb[0].mxu0 %v606
  %v884 = vpop.f32.mrb[0].mxu0
  %v885 = vadd.f32 %v675, %v884
  %v886 = vpop.f32.mrb[0].mxu0
  %v887 = vadd.f32 %v679, %v886
  %v888 = vpop.f32.mrb[0].mxu0
  %v889 = vadd.f32 %v675, %v888
  %v890 = vpop.f32.mrb[0].mxu0
  %v891 = vadd.f32 %v679, %v890
  %892 = vmatprep.mubr.bf16.mxu0 %v609
  %893 = vmatmul.mubr.bf16.gmra.mrb[0].mxu0 %v608
  %v894 = vpop.f32.mrb[0].mxu0
  %v895 = vadd.f32 %v675, %v894
  %v896 = vpop.f32.mrb[0].mxu0
  %v897 = vadd.f32 %v679, %v896
  %v898 = vpop.f32.mrb[0].mxu0
  %v899 = vadd.f32 %v675, %v898
  %v900 = vpop.f32.mrb[0].mxu0
  %v901 = vadd.f32 %v679, %v900
  %902 = vmatprep.mubr.bf16.mxu0 %v611
  %903 = vmatmul.mubr.bf16.gmra.mrb[0].mxu0 %v610
  %v904 = vpop.f32.mrb[0].mxu0
  %v905 = vadd.f32 %v675, %v904
  %v906 = vpop.f32.mrb[0].mxu0
  %v907 = vadd.f32 %v679, %v906
  %v908 = vpop.f32.mrb[0].mxu0
  %v909 = vadd.f32 %v675, %v908
  %v910 = vpop.f32.mrb[0].mxu0
  %v911 = vadd.f32 %v679, %v910
  %912 = vmatprep.mubr.bf16.mxu0 %v613
  %913 = vmatmul.mubr.bf16.gmra.mrb[0].mxu0 %v612
  %v914 = vpop.f32.mrb[0].mxu0
  %v915 = vadd.f32 %v675, %v914
  %v916 = vpop.f32.mrb[0].mxu0
  %v917 = vadd.f32 %v679, %v916
  %v918 = vpop.f32.mrb[0].mxu0
  %v919 = vadd.f32 %v675, %v918
  %v920 = vpop.f32.mrb[0].mxu0
  %v921 = vadd.f32 %v679, %v920
  %922 = vmatprep.mubr.bf16.mxu0 %v615
  %923 = vmatmul.mubr.bf16.gmra.mrb[0].mxu0 %v614
  %v924 = vpop.f32.mrb[0].mxu0
  %v925 = vadd.f32 %v675, %v924
  %v926 = vpop.f32.mrb[0].mxu0
  %v927 = vadd.f32 %v679, %v926
  %v928 = vpop.f32.mrb[0].mxu0
  %v929 = vadd.f32 %v675, %v928
  %v930 = vpop.f32.mrb[0].mxu0
  %v931 = vadd.f32 %v679, %v930
  %932 = vmatprep.mubr.bf16.mxu0 %v617
  %933 = vmatmul.mubr.bf16.gmra.mrb[0].mxu0 %v616
  %v934 = vpop.f32.mrb[0].mxu0
  %v935 = vadd.f32 %v675, %v934
  %v936 = vpop.f32.mrb[0].mxu0
  %v937 = vadd.f32 %v679, %v936
  %v938 = vpop.f32.mrb[0].mxu0
  %v939 = vadd.f32 %v675, %v938
  %v940 = vpop.f32.mrb[0].mxu0
  %v941 = vadd.f32 %v679, %v940
  %942 = vmatprep.mubr.bf16.mxu0 %v619
  %943 = vmatmul.mubr.bf16.gmra.mrb[0].mxu0 %v618
  %v944 = vpop.f32.mrb[0].mxu0
  %v945 = vadd.f32 %v675, %v944
  %v946 = vpop.f32.mrb[0].mxu0
  %v947 = vadd.f32 %v679, %v946
  %v948 = vpop.f32.mrb[0].mxu0
  %v949 = vadd.f32 %v675, %v948
  %v950 = vpop.f32.mrb[0].mxu0
  %v951 = vadd.f32 %v679, %v950
  %952 = vmatprep.mubr.bf16.mxu0 %v621
  %953 = vmatmul.mubr.bf16.gmra.mrb[0].mxu0 %v620
  %v954 = vpop.f32.mrb[0].mxu0
  %v955 = vadd.f32 %v675, %v954
  %v956 = vpop.f32.mrb[0].mxu0
  %v957 = vadd.f32 %v679, %v956
  %v958 = vpop.f32.mrb[0].mxu0
  %v959 = vadd.f32 %v675, %v958
  %v960 = vpop.f32.mrb[0].mxu0
  %v961 = vadd.f32 %v679, %v960
  %962 = vmatprep.mubr.bf16.mxu0 %v623
  %963 = vmatmul.mubr.bf16.gmra.mrb[0].mxu0 %v622
  %v964 = vpop.f32.mrb[0].mxu0
  %v965 = vadd.f32 %v675, %v964
  %v966 = vpop.f32.mrb[0].mxu0
  %v967 = vadd.f32 %v679, %v966
  %v968 = vpop.f32.mrb[0].mxu0
  %v969 = vadd.f32 %v675, %v968
  %v970 = vpop.f32.mrb[0].mxu0
  %v971 = vadd.f32 %v679, %v970
  %972 = vmatprep.mubr.bf16.mxu0 %v625
  %973 = vmatmul.mubr.bf16.gmra.mrb[0].mxu0 %v624
  %v974 = vpop.f32.mrb[0].mxu0
  %v975 = vadd.f32 %v675, %v974
  %v976 = vpop.f32.mrb[0].mxu0
  %v977 = vadd.f32 %v679, %v976
  %v978 = vpop.f32.mrb[0].mxu0
  %v979 = vadd.f32 %v675, %v978
  %v980 = vpop.f32.mrb[0].mxu0
  %v981 = vadd.f32 %v679, %v980
  %982 = vmatprep.mubr.bf16.mxu0 %v627
  %983 = vmatmul.mubr.bf16.gmra.mrb[0].mxu0 %v626
  %v984 = vpop.f32.mrb[0].mxu0
  %v985 = vadd.f32 %v675, %v984
  %v986 = vpop.f32.mrb[0].mxu0
  %v987 = vadd.f32 %v679, %v986
  %v988 = vpop.f32.mrb[0].mxu0
  %v989 = vadd.f32 %v675, %v988
  %v990 = vpop.f32.mrb[0].mxu0
  %v991 = vadd.f32 %v679, %v990
  %992 = vmatprep.mubr.bf16.mxu0 %v629
  %993 = vmatmul.mubr.bf16.gmra.mrb[0].mxu0 %v628
  %v994 = vpop.f32.mrb[0].mxu0
  %v995 = vadd.f32 %v675, %v994
  %v996 = vpop.f32.mrb[0].mxu0
  %v997 = vadd.f32 %v679, %v996
  %v998 = vpop.f32.mrb[0].mxu0
  %v999 = vpop.f32.mrb[0].mxu0
  %1000 = vdwg.mxu0
  %v1001 = vpack.c.bf16 %v879, %v875
  %v1002 = vpack.c.bf16 %v881, %v877
  %v1003 = vpack.c.bf16 %v889, %v885
  %v1004 = vpack.c.bf16 %v891, %v887
  %v1005 = vpack.c.bf16 %v899, %v895
  %v1006 = vpack.c.bf16 %v901, %v897
  %v1007 = vpack.c.bf16 %v909, %v905
  %v1008 = vpack.c.bf16 %v911, %v907
  %v1009 = vpack.c.bf16 %v919, %v915
  %v1010 = vpack.c.bf16 %v921, %v917
  %v1011 = vpack.c.bf16 %v929, %v925
  %v1012 = vpack.c.bf16 %v931, %v927
  %v1013 = vpack.c.bf16 %v939, %v935
  %v1014 = vpack.c.bf16 %v941, %v937
  %v1015 = vpack.c.bf16 %v949, %v945
  %v1016 = vpack.c.bf16 %v951, %v947
  %v1017 = vpack.c.bf16 %v959, %v955
  %v1018 = vpack.c.bf16 %v961, %v957
  %v1019 = vpack.c.bf16 %v969, %v965
  %v1020 = vpack.c.bf16 %v971, %v967
  %v1021 = vpack.c.bf16 %v979, %v975
  %v1022 = vpack.c.bf16 %v981, %v977
  %v1023 = vpack.c.bf16 %v989, %v985
  %v1024 = vpack.c.bf16 %v991, %v987
  %v1025 = vpack.c.bf16 %v995, %v995
  %v1026 = vpack.c.bf16 %v997, %v997
  %v1027 = vmul.bf16 %v1001, 1056980736
  %v1028 = vmul.bf16 %v1002, 1056980736
  %v1029 = vmul.bf16 %v1003, 1056980736
  %v1030 = vmul.bf16 %v1004, 1056980736
  %v1031 = vmul.bf16 %v1005, 1056980736
  %v1032 = vmul.bf16 %v1006, 1056980736
  %v1033 = vmul.bf16 %v1007, 1056980736
  %v1034 = vmul.bf16 %v1008, 1056980736
  %v1035 = vmul.bf16 %v1009, 1056980736
  %v1036 = vmul.bf16 %v1010, 1056980736
  %v1037 = vmul.bf16 %v1011, 1056980736
  %v1038 = vmul.bf16 %v1012, 1056980736
  %v1039 = vmul.bf16 %v1013, 1056980736
  %v1040 = vmul.bf16 %v1014, 1056980736
  %v1041 = vmul.bf16 %v1015, 1056980736
  %v1042 = vmul.bf16 %v1016, 1056980736
  %v1043 = vmul.bf16 %v1017, 1056980736
  %v1044 = vmul.bf16 %v1018, 1056980736
  %v1045 = vmul.bf16 %v1019, 1056980736
  %v1046 = vmul.bf16 %v1020, 1056980736
  %v1047 = vmul.bf16 %v1021, 1056980736
  %v1048 = vmul.bf16 %v1022, 1056980736
  %v1049 = vmul.bf16 %v1023, 1056980736
  %v1050 = vmul.bf16 %v1024, 1056980736
  %v1051 = vmul.bf16 %v1025, 1056980736
  %v1052 = vmul.bf16 %v1026, 1056980736
  %v1053 = vmul.bf16 %v1001, 1027030327
  %v1054 = vmul.bf16 %v1002, 1027030327
  %v1055 = vmul.bf16 %v1003, 1027030327
  %v1056 = vmul.bf16 %v1004, 1027030327
  %v1057 = vmul.bf16 %v1005, 1027030327
  %v1058 = vmul.bf16 %v1006, 1027030327
  %v1059 = vmul.bf16 %v1007, 1027030327
  %v1060 = vmul.bf16 %v1008, 1027030327
  %v1061 = vmul.bf16 %v1009, 1027030327
  %v1062 = vmul.bf16 %v1010, 1027030327
  %v1063 = vmul.bf16 %v1011, 1027030327
  %v1064 = vmul.bf16 %v1012, 1027030327
  %v1065 = vmul.bf16 %v1013, 1027030327
  %v1066 = vmul.bf16 %v1014, 1027030327
  %v1067 = vmul.bf16 %v1015, 1027030327
  %v1068 = vmul.bf16 %v1016, 1027030327
  %v1069 = vmul.bf16 %v1017, 1027030327
  %v1070 = vmul.bf16 %v1018, 1027030327
  %v1071 = vmul.bf16 %v1019, 1027030327
  %v1072 = vmul.bf16 %v1020, 1027030327
  %v1073 = vmul.bf16 %v1021, 1027030327
  %v1074 = vmul.bf16 %v1022, 1027030327
  %v1075 = vmul.bf16 %v1023, 1027030327
  %v1076 = vmul.bf16 %v1024, 1027030327
  %v1077 = vmul.bf16 %v1025, 1027030327
  %v1078 = vmul.bf16 %v1026, 1027030327
  %v1079 = vmul.bf16 %v1053, %v1001
  %v1080 = vmul.bf16 %v1054, %v1002
  %v1081 = vmul.bf16 %v1055, %v1003
  %v1082 = vmul.bf16 %v1056, %v1004
  %v1083 = vmul.bf16 %v1057, %v1005
  %v1084 = vmul.bf16 %v1058, %v1006
  %v1085 = vmul.bf16 %v1059, %v1007
  %v1086 = vmul.bf16 %v1060, %v1008
  %v1087 = vmul.bf16 %v1061, %v1009
  %v1088 = vmul.bf16 %v1062, %v1010
  %v1089 = vmul.bf16 %v1063, %v1011
  %v1090 = vmul.bf16 %v1064, %v1012
  %v1091 = vmul.bf16 %v1065, %v1013
  %v1092 = vmul.bf16 %v1066, %v1014
  %v1093 = vmul.bf16 %v1067, %v1015
  %v1094 = vmul.bf16 %v1068, %v1016
  %v1095 = vmul.bf16 %v1069, %v1017
  %v1096 = vmul.bf16 %v1070, %v1018
  %v1097 = vmul.bf16 %v1071, %v1019
  %v1098 = vmul.bf16 %v1072, %v1020
  %v1099 = vmul.bf16 %v1073, %v1021
  %v1100 = vmul.bf16 %v1074, %v1022
  %v1101 = vmul.bf16 %v1075, %v1023
  %v1102 = vmul.bf16 %v1076, %v1024
  %v1103 = vmul.bf16 %v1077, %v1025
  %v1104 = vmul.bf16 %v1078, %v1026
  %v1105 = vmul.bf16 %v1079, %v1001
  %v1106 = vmul.bf16 %v1080, %v1002
  %v1107 = vmul.bf16 %v1081, %v1003
  %v1108 = vmul.bf16 %v1082, %v1004
  %v1109 = vmul.bf16 %v1083, %v1005
  %v1110 = vmul.bf16 %v1084, %v1006
  %v1111 = vmul.bf16 %v1085, %v1007
  %v1112 = vmul.bf16 %v1086, %v1008
  %v1113 = vmul.bf16 %v1087, %v1009
  %v1114 = vmul.bf16 %v1088, %v1010
  %v1115 = vmul.bf16 %v1089, %v1011
  %v1116 = vmul.bf16 %v1090, %v1012
  %v1117 = vmul.bf16 %v1091, %v1013
  %v1118 = vmul.bf16 %v1092, %v1014
  %v1119 = vmul.bf16 %v1093, %v1015
  %v1120 = vmul.bf16 %v1094, %v1016
  %v1121 = vmul.bf16 %v1095, %v1017
  %v1122 = vmul.bf16 %v1096, %v1018
  %v1123 = vmul.bf16 %v1097, %v1019
  %v1124 = vmul.bf16 %v1098, %v1020
  %v1125 = vmul.bf16 %v1099, %v1021
  %v1126 = vmul.bf16 %v1100, %v1022
  %v1127 = vmul.bf16 %v1101, %v1023
  %v1128 = vmul.bf16 %v1102, %v1024
  %v1129 = vmul.bf16 %v1103, %v1025
  %v1130 = vmul.bf16 %v1104, %v1026
  %v1131 = vadd.bf16 %v1001, %v1105
  %v1132 = vadd.bf16 %v1002, %v1106
  %v1133 = vadd.bf16 %v1003, %v1107
  %v1134 = vadd.bf16 %v1004, %v1108
  %v1135 = vadd.bf16 %v1005, %v1109
  %v1136 = vadd.bf16 %v1006, %v1110
  %v1137 = vadd.bf16 %v1007, %v1111
  %v1138 = vadd.bf16 %v1008, %v1112
  %v1139 = vadd.bf16 %v1009, %v1113
  %v1140 = vadd.bf16 %v1010, %v1114
  %v1141 = vadd.bf16 %v1011, %v1115
  %v1142 = vadd.bf16 %v1012, %v1116
  %v1143 = vadd.bf16 %v1013, %v1117
  %v1144 = vadd.bf16 %v1014, %v1118
  %v1145 = vadd.bf16 %v1015, %v1119
  %v1146 = vadd.bf16 %v1016, %v1120
  %v1147 = vadd.bf16 %v1017, %v1121
  %v1148 = vadd.bf16 %v1018, %v1122
  %v1149 = vadd.bf16 %v1019, %v1123
  %v1150 = vadd.bf16 %v1020, %v1124
  %v1151 = vadd.bf16 %v1021, %v1125
  %v1152 = vadd.bf16 %v1022, %v1126
  %v1153 = vadd.bf16 %v1023, %v1127
  %v1154 = vadd.bf16 %v1024, %v1128
  %v1155 = vadd.bf16 %v1025, %v1129
  %v1156 = vadd.bf16 %v1026, %v1130
  %v1157 = vmul.bf16 %v1131, 1061961548
  %v1158 = vmul.bf16 %v1132, 1061961548
  %v1159 = vmul.bf16 %v1133, 1061961548
  %v1160 = vmul.bf16 %v1134, 1061961548
  %v1161 = vmul.bf16 %v1135, 1061961548
  %v1162 = vmul.bf16 %v1136, 1061961548
  %v1163 = vmul.bf16 %v1137, 1061961548
  %v1164 = vmul.bf16 %v1138, 1061961548
  %v1165 = vmul.bf16 %v1139, 1061961548
  %v1166 = vmul.bf16 %v1140, 1061961548
  %v1167 = vmul.bf16 %v1141, 1061961548
  %v1168 = vmul.bf16 %v1142, 1061961548
  %v1169 = vmul.bf16 %v1143, 1061961548
  %v1170 = vmul.bf16 %v1144, 1061961548
  %v1171 = vmul.bf16 %v1145, 1061961548
  %v1172 = vmul.bf16 %v1146, 1061961548
  %v1173 = vmul.bf16 %v1147, 1061961548
  %v1174 = vmul.bf16 %v1148, 1061961548
  %v1175 = vmul.bf16 %v1149, 1061961548
  %v1176 = vmul.bf16 %v1150, 1061961548
  %v1177 = vmul.bf16 %v1151, 1061961548
  %v1178 = vmul.bf16 %v1152, 1061961548
  %v1179 = vmul.bf16 %v1153, 1061961548
  %v1180 = vmul.bf16 %v1154, 1061961548
  %v1181 = vmul.bf16 %v1155, 1061961548
  %v1182 = vmul.bf16 %v1156, 1061961548
  %v1183 = vtanh.bf16.pop %v1157
  %v1184 = vtanh.bf16.pop %v1158
  %v1185 = vtanh.bf16.pop %v1159
  %v1186 = vtanh.bf16.pop %v1160
  %v1187 = vtanh.bf16.pop %v1161
  %v1188 = vtanh.bf16.pop %v1162
  %v1189 = vtanh.bf16.pop %v1163
  %v1190 = vtanh.bf16.pop %v1164
  %v1191 = vtanh.bf16.pop %v1165
  %v1192 = vtanh.bf16.pop %v1166
  %v1193 = vtanh.bf16.pop %v1167
  %v1194 = vtanh.bf16.pop %v1168
  %v1195 = vtanh.bf16.pop %v1169
  %v1196 = vtanh.bf16.pop %v1170
  %v1197 = vtanh.bf16.pop %v1171
  %v1198 = vtanh.bf16.pop %v1172
  %v1199 = vtanh.bf16.pop %v1173
  %v1200 = vtanh.bf16.pop %v1174
  %v1201 = vtanh.bf16.pop %v1175
  %v1202 = vtanh.bf16.pop %v1176
  %v1203 = vtanh.bf16.pop %v1177
  %v1204 = vtanh.bf16.pop %v1178
  %v1205 = vtanh.bf16.pop %v1179
  %v1206 = vtanh.bf16.pop %v1180
  %v1207 = vtanh.bf16.pop %v1181
  %v1208 = vtanh.bf16.pop %v1182
  %v1209 = vadd.bf16 %v1183, 1065369472
  %v1210 = vadd.bf16 %v1184, 1065369472
  %v1211 = vadd.bf16 %v1185, 1065369472
  %v1212 = vadd.bf16 %v1186, 1065369472
  %v1213 = vadd.bf16 %v1187, 1065369472
  %v1214 = vadd.bf16 %v1188, 1065369472
  %v1215 = vadd.bf16 %v1189, 1065369472
  %v1216 = vadd.bf16 %v1190, 1065369472
  %v1217 = vadd.bf16 %v1191, 1065369472
  %v1218 = vadd.bf16 %v1192, 1065369472
  %v1219 = vadd.bf16 %v1193, 1065369472
  %v1220 = vadd.bf16 %v1194, 1065369472
  %v1221 = vadd.bf16 %v1195, 1065369472
  %v1222 = vadd.bf16 %v1196, 1065369472
  %v1223 = vadd.bf16 %v1197, 1065369472
  %v1224 = vadd.bf16 %v1198, 1065369472
  %v1225 = vadd.bf16 %v1199, 1065369472
  %v1226 = vadd.bf16 %v1200, 1065369472
  %v1227 = vadd.bf16 %v1201, 1065369472
  %v1228 = vadd.bf16 %v1202, 1065369472
  %v1229 = vadd.bf16 %v1203, 1065369472
  %v1230 = vadd.bf16 %v1204, 1065369472
  %v1231 = vadd.bf16 %v1205, 1065369472
  %v1232 = vadd.bf16 %v1206, 1065369472
  %v1233 = vadd.bf16 %v1207, 1065369472
  %v1234 = vadd.bf16 %v1208, 1065369472
  %v1235 = vmul.bf16 %v1027, %v1209
  %v1236 = vmul.bf16 %v1028, %v1210
  %v1237 = vmul.bf16 %v1029, %v1211
  %v1238 = vmul.bf16 %v1030, %v1212
  %v1239 = vmul.bf16 %v1031, %v1213
  %v1240 = vmul.bf16 %v1032, %v1214
  %v1241 = vmul.bf16 %v1033, %v1215
  %v1242 = vmul.bf16 %v1034, %v1216
  %v1243 = vmul.bf16 %v1035, %v1217
  %v1244 = vmul.bf16 %v1036, %v1218
  %v1245 = vmul.bf16 %v1037, %v1219
  %v1246 = vmul.bf16 %v1038, %v1220
  %v1247 = vmul.bf16 %v1039, %v1221
  %v1248 = vmul.bf16 %v1040, %v1222
  %v1249 = vmul.bf16 %v1041, %v1223
  %v1250 = vmul.bf16 %v1042, %v1224
  %v1251 = vmul.bf16 %v1043, %v1225
  %v1252 = vmul.bf16 %v1044, %v1226
  %v1253 = vmul.bf16 %v1045, %v1227
  %v1254 = vmul.bf16 %v1046, %v1228
  %v1255 = vmul.bf16 %v1047, %v1229
  %v1256 = vmul.bf16 %v1048, %v1230
  %v1257 = vmul.bf16 %v1049, %v1231
  %v1258 = vmul.bf16 %v1050, %v1232
  %v1259 = vmul.bf16 %v1051, %v1233
  %v1260 = vmul.bf16 %v1052, %v1234
  %v1261 = vld [vmem:[%s3] sm:$0xff]
  %v1262 = vld [vmem:[%s3 + $0x8] sm:$0xff]
  %v1263 = vld [vmem:[%s3 + $0x10] sm:$0xff]
  %v1264 = vld [vmem:[%s3 + $0x18] sm:$0xff]
  %v1265 = vld [vmem:[%s3 + $0x20] sm:$0xff]
  %v1266 = vld [vmem:[%s3 + $0x28] sm:$0xff]
  %v1267 = vld [vmem:[%s3 + $0x30] sm:$0xff]
  %v1268 = vld [vmem:[%s3 + $0x38] sm:$0xff]
  %v1269 = vld [vmem:[%s3 + $0x40] sm:$0xff]
  %v1270 = vld [vmem:[%s3 + $0x48] sm:$0xff]
  %v1271 = vld [vmem:[%s3 + $0x50] sm:$0xff]
  %v1272 = vld [vmem:[%s3 + $0x58] sm:$0xff]
  %v1273 = vld [vmem:[%s3 + $0x60] sm:$0xff]
  %v1274 = vld [vmem:[%s3 + $0x68] sm:$0xff]
  %v1275 = vld [vmem:[%s3 + $0x70] sm:$0xff]
  %v1276 = vld [vmem:[%s3 + $0x78] sm:$0xff]
  %v1277 = vld [vmem:[%s3 + $0x80] sm:$0xff]
  %v1278 = vld [vmem:[%s3 + $0x88] sm:$0xff]
  %v1279 = vld [vmem:[%s3 + $0x90] sm:$0xff]
  %v1280 = vld [vmem:[%s3 + $0x98] sm:$0xff]
  %v1281 = vld [vmem:[%s3 + $0xa0] sm:$0xff]
  %v1282 = vld [vmem:[%s3 + $0xa8] sm:$0xff]
  %v1283 = vld [vmem:[%s3 + $0xb0] sm:$0xff]
  %v1284 = vld [vmem:[%s3 + $0xb8] sm:$0xff]
  %v1285 = vld [vmem:[%s3 + $0xc0] sm:$0xff]
  %v1286 = vld [vmem:[%s3 + $0xc8] sm:$0xff]
  %v1287 = vld [vmem:[%s3 + $0xd0] sm:$0xff]
  %v1288 = vld [vmem:[%s3 + $0xd8] sm:$0xff]
  %v1289 = vld [vmem:[%s3 + $0xe0] sm:$0xff]
  %v1290 = vld [vmem:[%s3 + $0xe8] sm:$0xff]
  %v1291 = vld [vmem:[%s3 + $0xf0] sm:$0xff]
  %v1292 = vld [vmem:[%s3 + $0xf8] sm:$0xff]
  %v1293 = vlaneseq
  %v1294 = vshrl.u32 %v1293, 7
  %v1295 = vsub.s32 2, %v1294
  %v1296 = vrot.slane %v56, %v1295
  %v1297 = vlaneseq
  %v1298 = vshrl.u32 %v1297, 7
  %v1299 = vsub.s32 6, %v1298
  %v1300 = vrot.slane %v56, %v1299
  %v1303 = vlaneseq
  %v1304 = vshrl.u32 %v1303, 7
  %v1305 = vsub.s32 2, %v1304
  %v1306 = vrot.slane %v1296, %v1305
  %v1307 = vlaneseq
  %v1308 = vshrl.u32 %v1307, 7
  %v1309 = vsub.s32 2, %v1308
  %v1310 = vrot.slane %v1300, %v1309
  %v1343 = vunpack.c.l.b16 %v1261
  %v1344 = vunpack.c.h.b16 %v1261
  %v1345 = vunpack.c.l.b16 %v1262
  %v1346 = vunpack.c.h.b16 %v1262
  %v1347 = vunpack.c.l.b16 %v1263
  %v1348 = vunpack.c.h.b16 %v1263
  %v1349 = vunpack.c.l.b16 %v1264
  %v1350 = vunpack.c.h.b16 %v1264
  %v1351 = vunpack.c.l.b16 %v1265
  %v1352 = vunpack.c.h.b16 %v1265
  %v1353 = vunpack.c.l.b16 %v1266
  %v1354 = vunpack.c.h.b16 %v1266
  %v1355 = vunpack.c.l.b16 %v1267
  %v1356 = vunpack.c.h.b16 %v1267
  %v1357 = vunpack.c.l.b16 %v1268
  %v1358 = vunpack.c.h.b16 %v1268
  %v1359 = vunpack.c.l.b16 %v1269
  %v1360 = vunpack.c.h.b16 %v1269
  %v1361 = vunpack.c.l.b16 %v1270
  %v1362 = vunpack.c.h.b16 %v1270
  %v1363 = vunpack.c.l.b16 %v1271
  %v1364 = vunpack.c.h.b16 %v1271
  %v1365 = vunpack.c.l.b16 %v1272
  %v1366 = vunpack.c.h.b16 %v1272
  %v1367 = vunpack.c.l.b16 %v1273
  %v1368 = vunpack.c.h.b16 %v1273
  %v1369 = vunpack.c.l.b16 %v1274
  %v1370 = vunpack.c.h.b16 %v1274
  %v1371 = vunpack.c.l.b16 %v1275
  %v1372 = vunpack.c.h.b16 %v1275
  %v1373 = vunpack.c.l.b16 %v1276
  %v1374 = vunpack.c.h.b16 %v1276
  %v1375 = vunpack.c.l.b16 %v1277
  %v1376 = vunpack.c.h.b16 %v1277
  %v1377 = vunpack.c.l.b16 %v1278
  %v1378 = vunpack.c.h.b16 %v1278
  %v1379 = vunpack.c.l.b16 %v1279
  %v1380 = vunpack.c.h.b16 %v1279
  %v1381 = vunpack.c.l.b16 %v1280
  %v1382 = vunpack.c.h.b16 %v1280
  %v1383 = vunpack.c.l.b16 %v1281
  %v1384 = vunpack.c.h.b16 %v1281
  %v1385 = vunpack.c.l.b16 %v1282
  %v1386 = vunpack.c.h.b16 %v1282
  %v1387 = vunpack.c.l.b16 %v1283
  %v1388 = vunpack.c.h.b16 %v1283
  %v1389 = vunpack.c.l.b16 %v1284
  %v1390 = vunpack.c.h.b16 %v1284
  %v1391 = vunpack.c.l.b16 %v1285
  %v1392 = vunpack.c.h.b16 %v1285
  %v1393 = vunpack.c.l.b16 %v1286
  %v1394 = vunpack.c.h.b16 %v1286
  %v1395 = vunpack.c.l.b16 %v1287
  %v1396 = vunpack.c.h.b16 %v1287
  %v1397 = vunpack.c.l.b16 %v1288
  %v1398 = vunpack.c.h.b16 %v1288
  %v1399 = vunpack.c.l.b16 %v1289
  %v1400 = vunpack.c.h.b16 %v1289
  %v1401 = vunpack.c.l.b16 %v1290
  %v1402 = vunpack.c.h.b16 %v1290
  %v1403 = vunpack.c.l.b16 %v1291
  %v1404 = vunpack.c.h.b16 %v1291
  %v1405 = vunpack.c.l.b16 %v1292
  %v1406 = vunpack.c.h.b16 %v1292
  %v1407 = vpack.c.b16 %v1345, %v1343
  %v1408 = vpack.c.b16 %v1346, %v1344
  %v1409 = vpack.c.b16 %v1349, %v1347
  %v1410 = vpack.c.b16 %v1350, %v1348
  %v1411 = vpack.c.b16 %v1353, %v1351
  %v1412 = vpack.c.b16 %v1354, %v1352
  %v1413 = vpack.c.b16 %v1357, %v1355
  %v1414 = vpack.c.b16 %v1358, %v1356
  %v1415 = vpack.c.b16 %v1361, %v1359
  %v1416 = vpack.c.b16 %v1362, %v1360
  %v1417 = vpack.c.b16 %v1365, %v1363
  %v1418 = vpack.c.b16 %v1366, %v1364
  %v1419 = vpack.c.b16 %v1369, %v1367
  %v1420 = vpack.c.b16 %v1370, %v1368
  %v1421 = vpack.c.b16 %v1373, %v1371
  %v1422 = vpack.c.b16 %v1374, %v1372
  %v1423 = vpack.c.b16 %v1377, %v1375
  %v1424 = vpack.c.b16 %v1378, %v1376
  %v1425 = vpack.c.b16 %v1381, %v1379
  %v1426 = vpack.c.b16 %v1382, %v1380
  %v1427 = vpack.c.b16 %v1385, %v1383
  %v1428 = vpack.c.b16 %v1386, %v1384
  %v1429 = vpack.c.b16 %v1389, %v1387
  %v1430 = vpack.c.b16 %v1390, %v1388
  %v1431 = vpack.c.b16 %v1393, %v1391
  %v1432 = vpack.c.b16 %v1394, %v1392
  %v1433 = vpack.c.b16 %v1397, %v1395
  %v1434 = vpack.c.b16 %v1398, %v1396
  %v1435 = vpack.c.b16 %v1401, %v1399
  %v1436 = vpack.c.b16 %v1402, %v1400
  %v1437 = vpack.c.b16 %v1405, %v1403
  %v1438 = vpack.c.b16 %v1406, %v1404
  %1471 = vmatprep.subr.bf16.mxu0 %v1408
  %1472 = vmatpush1.bf16.msra.mxu0 %v1407
  %1473 = vmatprep.subr.bf16.mxu0 %v1410
  %1474 = vmatpush1.bf16.msra.mxu0 %v1409
  %1475 = vmatprep.subr.bf16.mxu0 %v1412
  %1476 = vmatpush1.bf16.msra.mxu0 %v1411
  %1477 = vmatprep.subr.bf16.mxu0 %v1414
  %1478 = vmatpush1.bf16.msra.mxu0 %v1413
  %1479 = vmatprep.subr.bf16.mxu0 %v1416
  %1480 = vmatpush1.bf16.msra.mxu0 %v1415
  %1481 = vmatprep.subr.bf16.mxu0 %v1418
  %1482 = vmatpush1.bf16.msra.mxu0 %v1417
  %1483 = vmatprep.subr.bf16.mxu0 %v1420
  %1484 = vmatpush1.bf16.msra.mxu0 %v1419
  %1485 = vmatprep.subr.bf16.mxu0 %v1422
  %1486 = vmatpush1.bf16.msra.mxu0 %v1421
  %1487 = vmatprep.subr.bf16.mxu0 %v1424
  %1488 = vmatpush1.bf16.msra.mxu0 %v1423
  %1489 = vmatprep.subr.bf16.mxu0 %v1426
  %1490 = vmatpush1.bf16.msra.mxu0 %v1425
  %1491 = vmatprep.subr.bf16.mxu0 %v1428
  %1492 = vmatpush1.bf16.msra.mxu0 %v1427
  %1493 = vmatprep.subr.bf16.mxu0 %v1430
  %1494 = vmatpush1.bf16.msra.mxu0 %v1429
  %1495 = vmatprep.subr.bf16.mxu0 %v1432
  %1496 = vmatpush1.bf16.msra.mxu0 %v1431
  %1497 = vmatprep.subr.bf16.mxu0 %v1434
  %1498 = vmatpush1.bf16.msra.mxu0 %v1433
  %1499 = vmatprep.subr.bf16.mxu0 %v1436
  %1500 = vmatpush1.bf16.msra.mxu0 %v1435
  %1501 = vmatprep.subr.bf16.mxu0 %v1438
  %1502 = vmatpush1.bf16.msra.mxu0 %v1437
  %1503 = vmatprep.mubr.bf16.mxu0 %v1236
  %1504 = vmatmul.mubr.bf16.gmra.mrb[0].mxu0 %v1235
  %v1505 = vpop.f32.mrb[0].mxu0
  %v1506 = vadd.f32 %v1306, %v1505
  %v1507 = vpop.f32.mrb[0].mxu0
  %v1508 = vadd.f32 %v1310, %v1507
  %v1509 = vpop.f32.mrb[0].mxu0
  %v1510 = vadd.f32 %v1306, %v1509
  %v1511 = vpop.f32.mrb[0].mxu0
  %v1512 = vadd.f32 %v1310, %v1511
  %1513 = vmatprep.mubr.bf16.mxu0 %v1238
  %1514 = vmatmul.mubr.bf16.gmra.mrb[0].mxu0 %v1237
  %v1515 = vpop.f32.mrb[0].mxu0
  %v1516 = vadd.f32 %v1306, %v1515
  %v1517 = vpop.f32.mrb[0].mxu0
  %v1518 = vadd.f32 %v1310, %v1517
  %v1519 = vpop.f32.mrb[0].mxu0
  %v1520 = vadd.f32 %v1306, %v1519
  %v1521 = vpop.f32.mrb[0].mxu0
  %v1522 = vadd.f32 %v1310, %v1521
  %1523 = vmatprep.mubr.bf16.mxu0 %v1240
  %1524 = vmatmul.mubr.bf16.gmra.mrb[0].mxu0 %v1239
  %v1525 = vpop.f32.mrb[0].mxu0
  %v1526 = vadd.f32 %v1306, %v1525
  %v1527 = vpop.f32.mrb[0].mxu0
  %v1528 = vadd.f32 %v1310, %v1527
  %v1529 = vpop.f32.mrb[0].mxu0
  %v1530 = vadd.f32 %v1306, %v1529
  %v1531 = vpop.f32.mrb[0].mxu0
  %v1532 = vadd.f32 %v1310, %v1531
  %1533 = vmatprep.mubr.bf16.mxu0 %v1242
  %1534 = vmatmul.mubr.bf16.gmra.mrb[0].mxu0 %v1241
  %v1535 = vpop.f32.mrb[0].mxu0
  %v1536 = vadd.f32 %v1306, %v1535
  %v1537 = vpop.f32.mrb[0].mxu0
  %v1538 = vadd.f32 %v1310, %v1537
  %v1539 = vpop.f32.mrb[0].mxu0
  %v1540 = vadd.f32 %v1306, %v1539
  %v1541 = vpop.f32.mrb[0].mxu0
  %v1542 = vadd.f32 %v1310, %v1541
  %1543 = vmatprep.mubr.bf16.mxu0 %v1244
  %1544 = vmatmul.mubr.bf16.gmra.mrb[0].mxu0 %v1243
  %v1545 = vpop.f32.mrb[0].mxu0
  %v1546 = vadd.f32 %v1306, %v1545
  %v1547 = vpop.f32.mrb[0].mxu0
  %v1548 = vadd.f32 %v1310, %v1547
  %v1549 = vpop.f32.mrb[0].mxu0
  %v1550 = vadd.f32 %v1306, %v1549
  %v1551 = vpop.f32.mrb[0].mxu0
  %v1552 = vadd.f32 %v1310, %v1551
  %1553 = vmatprep.mubr.bf16.mxu0 %v1246
  %1554 = vmatmul.mubr.bf16.gmra.mrb[0].mxu0 %v1245
  %v1555 = vpop.f32.mrb[0].mxu0
  %v1556 = vadd.f32 %v1306, %v1555
  %v1557 = vpop.f32.mrb[0].mxu0
  %v1558 = vadd.f32 %v1310, %v1557
  %v1559 = vpop.f32.mrb[0].mxu0
  %v1560 = vadd.f32 %v1306, %v1559
  %v1561 = vpop.f32.mrb[0].mxu0
  %v1562 = vadd.f32 %v1310, %v1561
  %1563 = vmatprep.mubr.bf16.mxu0 %v1248
  %1564 = vmatmul.mubr.bf16.gmra.mrb[0].mxu0 %v1247
  %v1565 = vpop.f32.mrb[0].mxu0
  %v1566 = vadd.f32 %v1306, %v1565
  %v1567 = vpop.f32.mrb[0].mxu0
  %v1568 = vadd.f32 %v1310, %v1567
  %v1569 = vpop.f32.mrb[0].mxu0
  %v1570 = vadd.f32 %v1306, %v1569
  %v1571 = vpop.f32.mrb[0].mxu0
  %v1572 = vadd.f32 %v1310, %v1571
  %1573 = vmatprep.mubr.bf16.mxu0 %v1250
  %1574 = vmatmul.mubr.bf16.gmra.mrb[0].mxu0 %v1249
  %v1575 = vpop.f32.mrb[0].mxu0
  %v1576 = vadd.f32 %v1306, %v1575
  %v1577 = vpop.f32.mrb[0].mxu0
  %v1578 = vadd.f32 %v1310, %v1577
  %v1579 = vpop.f32.mrb[0].mxu0
  %v1580 = vadd.f32 %v1306, %v1579
  %v1581 = vpop.f32.mrb[0].mxu0
  %v1582 = vadd.f32 %v1310, %v1581
  %1583 = vmatprep.mubr.bf16.mxu0 %v1252
  %1584 = vmatmul.mubr.bf16.gmra.mrb[0].mxu0 %v1251
  %v1585 = vpop.f32.mrb[0].mxu0
  %v1586 = vadd.f32 %v1306, %v1585
  %v1587 = vpop.f32.mrb[0].mxu0
  %v1588 = vadd.f32 %v1310, %v1587
  %v1589 = vpop.f32.mrb[0].mxu0
  %v1590 = vadd.f32 %v1306, %v1589
  %v1591 = vpop.f32.mrb[0].mxu0
  %v1592 = vadd.f32 %v1310, %v1591
  %1593 = vmatprep.mubr.bf16.mxu0 %v1254
  %1594 = vmatmul.mubr.bf16.gmra.mrb[0].mxu0 %v1253
  %v1595 = vpop.f32.mrb[0].mxu0
  %v1596 = vadd.f32 %v1306, %v1595
  %v1597 = vpop.f32.mrb[0].mxu0
  %v1598 = vadd.f32 %v1310, %v1597
  %v1599 = vpop.f32.mrb[0].mxu0
  %v1600 = vadd.f32 %v1306, %v1599
  %v1601 = vpop.f32.mrb[0].mxu0
  %v1602 = vadd.f32 %v1310, %v1601
  %1603 = vmatprep.mubr.bf16.mxu0 %v1256
  %1604 = vmatmul.mubr.bf16.gmra.mrb[0].mxu0 %v1255
  %v1605 = vpop.f32.mrb[0].mxu0
  %v1606 = vadd.f32 %v1306, %v1605
  %v1607 = vpop.f32.mrb[0].mxu0
  %v1608 = vadd.f32 %v1310, %v1607
  %v1609 = vpop.f32.mrb[0].mxu0
  %v1610 = vadd.f32 %v1306, %v1609
  %v1611 = vpop.f32.mrb[0].mxu0
  %v1612 = vadd.f32 %v1310, %v1611
  %1613 = vmatprep.mubr.bf16.mxu0 %v1258
  %1614 = vmatmul.mubr.bf16.gmra.mrb[0].mxu0 %v1257
  %v1615 = vpop.f32.mrb[0].mxu0
  %v1616 = vadd.f32 %v1306, %v1615
  %v1617 = vpop.f32.mrb[0].mxu0
  %v1618 = vadd.f32 %v1310, %v1617
  %v1619 = vpop.f32.mrb[0].mxu0
  %v1620 = vadd.f32 %v1306, %v1619
  %v1621 = vpop.f32.mrb[0].mxu0
  %v1622 = vadd.f32 %v1310, %v1621
  %1623 = vmatprep.mubr.bf16.mxu0 %v1260
  %1624 = vmatmul.mubr.bf16.gmra.mrb[0].mxu0 %v1259
  %v1625 = vpop.f32.mrb[0].mxu0
  %v1626 = vadd.f32 %v1306, %v1625
  %v1627 = vpop.f32.mrb[0].mxu0
  %v1628 = vadd.f32 %v1310, %v1627
  %v1629 = vpop.f32.mrb[0].mxu0
  %v1630 = vpop.f32.mrb[0].mxu0
  %1631 = vdwg.mxu0
  %v1632 = vpack.c.bf16 %v1510, %v1506
  %v1633 = vpack.c.bf16 %v1512, %v1508
  %v1634 = vpack.c.bf16 %v1520, %v1516
  %v1635 = vpack.c.bf16 %v1522, %v1518
  %v1636 = vpack.c.bf16 %v1530, %v1526
  %v1637 = vpack.c.bf16 %v1532, %v1528
  %v1638 = vpack.c.bf16 %v1540, %v1536
  %v1639 = vpack.c.bf16 %v1542, %v1538
  %v1640 = vpack.c.bf16 %v1550, %v1546
  %v1641 = vpack.c.bf16 %v1552, %v1548
  %v1642 = vpack.c.bf16 %v1560, %v1556
  %v1643 = vpack.c.bf16 %v1562, %v1558
  %v1644 = vpack.c.bf16 %v1570, %v1566
  %v1645 = vpack.c.bf16 %v1572, %v1568
  %v1646 = vpack.c.bf16 %v1580, %v1576
  %v1647 = vpack.c.bf16 %v1582, %v1578
  %v1648 = vpack.c.bf16 %v1590, %v1586
  %v1649 = vpack.c.bf16 %v1592, %v1588
  %v1650 = vpack.c.bf16 %v1600, %v1596
  %v1651 = vpack.c.bf16 %v1602, %v1598
  %v1652 = vpack.c.bf16 %v1610, %v1606
  %v1653 = vpack.c.bf16 %v1612, %v1608
  %v1654 = vpack.c.bf16 %v1620, %v1616
  %v1655 = vpack.c.bf16 %v1622, %v1618
  %v1656 = vpack.c.bf16 %v1626, %v1626
  %v1657 = vpack.c.bf16 %v1628, %v1628
  %v1658 = vmul.bf16 %v1632, 1056980736
  %v1659 = vmul.bf16 %v1633, 1056980736
  %v1660 = vmul.bf16 %v1634, 1056980736
  %v1661 = vmul.bf16 %v1635, 1056980736
  %v1662 = vmul.bf16 %v1636, 1056980736
  %v1663 = vmul.bf16 %v1637, 1056980736
  %v1664 = vmul.bf16 %v1638, 1056980736
  %v1665 = vmul.bf16 %v1639, 1056980736
  %v1666 = vmul.bf16 %v1640, 1056980736
  %v1667 = vmul.bf16 %v1641, 1056980736
  %v1668 = vmul.bf16 %v1642, 1056980736
  %v1669 = vmul.bf16 %v1643, 1056980736
  %v1670 = vmul.bf16 %v1644, 1056980736
  %v1671 = vmul.bf16 %v1645, 1056980736
  %v1672 = vmul.bf16 %v1646, 1056980736
  %v1673 = vmul.bf16 %v1647, 1056980736
  %v1674 = vmul.bf16 %v1648, 1056980736
  %v1675 = vmul.bf16 %v1649, 1056980736
  %v1676 = vmul.bf16 %v1650, 1056980736
  %v1677 = vmul.bf16 %v1651, 1056980736
  %v1678 = vmul.bf16 %v1652, 1056980736
  %v1679 = vmul.bf16 %v1653, 1056980736
  %v1680 = vmul.bf16 %v1654, 1056980736
  %v1681 = vmul.bf16 %v1655, 1056980736
  %v1682 = vmul.bf16 %v1656, 1056980736
  %v1683 = vmul.bf16 %v1657, 1056980736
  %v1684 = vmul.bf16 %v1632, 1027030327
  %v1685 = vmul.bf16 %v1633, 1027030327
  %v1686 = vmul.bf16 %v1634, 1027030327
  %v1687 = vmul.bf16 %v1635, 1027030327
  %v1688 = vmul.bf16 %v1636, 1027030327
  %v1689 = vmul.bf16 %v1637, 1027030327
  %v1690 = vmul.bf16 %v1638, 1027030327
  %v1691 = vmul.bf16 %v1639, 1027030327
  %v1692 = vmul.bf16 %v1640, 1027030327
  %v1693 = vmul.bf16 %v1641, 1027030327
  %v1694 = vmul.bf16 %v1642, 1027030327
  %v1695 = vmul.bf16 %v1643, 1027030327
  %v1696 = vmul.bf16 %v1644, 1027030327
  %v1697 = vmul.bf16 %v1645, 1027030327
  %v1698 = vmul.bf16 %v1646, 1027030327
  %v1699 = vmul.bf16 %v1647, 1027030327
  %v1700 = vmul.bf16 %v1648, 1027030327
  %v1701 = vmul.bf16 %v1649, 1027030327
  %v1702 = vmul.bf16 %v1650, 1027030327
  %v1703 = vmul.bf16 %v1651, 1027030327
  %v1704 = vmul.bf16 %v1652, 1027030327
  %v1705 = vmul.bf16 %v1653, 1027030327
  %v1706 = vmul.bf16 %v1654, 1027030327
  %v1707 = vmul.bf16 %v1655, 1027030327
  %v1708 = vmul.bf16 %v1656, 1027030327
  %v1709 = vmul.bf16 %v1657, 1027030327
  %v1710 = vmul.bf16 %v1684, %v1632
  %v1711 = vmul.bf16 %v1685, %v1633
  %v1712 = vmul.bf16 %v1686, %v1634
  %v1713 = vmul.bf16 %v1687, %v1635
  %v1714 = vmul.bf16 %v1688, %v1636
  %v1715 = vmul.bf16 %v1689, %v1637
  %v1716 = vmul.bf16 %v1690, %v1638
  %v1717 = vmul.bf16 %v1691, %v1639
  %v1718 = vmul.bf16 %v1692, %v1640
  %v1719 = vmul.bf16 %v1693, %v1641
  %v1720 = vmul.bf16 %v1694, %v1642
  %v1721 = vmul.bf16 %v1695, %v1643
  %v1722 = vmul.bf16 %v1696, %v1644
  %v1723 = vmul.bf16 %v1697, %v1645
  %v1724 = vmul.bf16 %v1698, %v1646
  %v1725 = vmul.bf16 %v1699, %v1647
  %v1726 = vmul.bf16 %v1700, %v1648
  %v1727 = vmul.bf16 %v1701, %v1649
  %v1728 = vmul.bf16 %v1702, %v1650
  %v1729 = vmul.bf16 %v1703, %v1651
  %v1730 = vmul.bf16 %v1704, %v1652
  %v1731 = vmul.bf16 %v1705, %v1653
  %v1732 = vmul.bf16 %v1706, %v1654
  %v1733 = vmul.bf16 %v1707, %v1655
  %v1734 = vmul.bf16 %v1708, %v1656
  %v1735 = vmul.bf16 %v1709, %v1657
  %v1736 = vmul.bf16 %v1710, %v1632
  %v1737 = vmul.bf16 %v1711, %v1633
  %v1738 = vmul.bf16 %v1712, %v1634
  %v1739 = vmul.bf16 %v1713, %v1635
  %v1740 = vmul.bf16 %v1714, %v1636
  %v1741 = vmul.bf16 %v1715, %v1637
  %v1742 = vmul.bf16 %v1716, %v1638
  %v1743 = vmul.bf16 %v1717, %v1639
  %v1744 = vmul.bf16 %v1718, %v1640
  %v1745 = vmul.bf16 %v1719, %v1641
  %v1746 = vmul.bf16 %v1720, %v1642
  %v1747 = vmul.bf16 %v1721, %v1643
  %v1748 = vmul.bf16 %v1722, %v1644
  %v1749 = vmul.bf16 %v1723, %v1645
  %v1750 = vmul.bf16 %v1724, %v1646
  %v1751 = vmul.bf16 %v1725, %v1647
  %v1752 = vmul.bf16 %v1726, %v1648
  %v1753 = vmul.bf16 %v1727, %v1649
  %v1754 = vmul.bf16 %v1728, %v1650
  %v1755 = vmul.bf16 %v1729, %v1651
  %v1756 = vmul.bf16 %v1730, %v1652
  %v1757 = vmul.bf16 %v1731, %v1653
  %v1758 = vmul.bf16 %v1732, %v1654
  %v1759 = vmul.bf16 %v1733, %v1655
  %v1760 = vmul.bf16 %v1734, %v1656
  %v1761 = vmul.bf16 %v1735, %v1657
  %v1762 = vadd.bf16 %v1632, %v1736
  %v1763 = vadd.bf16 %v1633, %v1737
  %v1764 = vadd.bf16 %v1634, %v1738
  %v1765 = vadd.bf16 %v1635, %v1739
  %v1766 = vadd.bf16 %v1636, %v1740
  %v1767 = vadd.bf16 %v1637, %v1741
  %v1768 = vadd.bf16 %v1638, %v1742
  %v1769 = vadd.bf16 %v1639, %v1743
  %v1770 = vadd.bf16 %v1640, %v1744
  %v1771 = vadd.bf16 %v1641, %v1745
  %v1772 = vadd.bf16 %v1642, %v1746
  %v1773 = vadd.bf16 %v1643, %v1747
  %v1774 = vadd.bf16 %v1644, %v1748
  %v1775 = vadd.bf16 %v1645, %v1749
  %v1776 = vadd.bf16 %v1646, %v1750
  %v1777 = vadd.bf16 %v1647, %v1751
  %v1778 = vadd.bf16 %v1648, %v1752
  %v1779 = vadd.bf16 %v1649, %v1753
  %v1780 = vadd.bf16 %v1650, %v1754
  %v1781 = vadd.bf16 %v1651, %v1755
  %v1782 = vadd.bf16 %v1652, %v1756
  %v1783 = vadd.bf16 %v1653, %v1757
  %v1784 = vadd.bf16 %v1654, %v1758
  %v1785 = vadd.bf16 %v1655, %v1759
  %v1786 = vadd.bf16 %v1656, %v1760
  %v1787 = vadd.bf16 %v1657, %v1761
  %v1788 = vmul.bf16 %v1762, 1061961548
  %v1789 = vmul.bf16 %v1763, 1061961548
  %v1790 = vmul.bf16 %v1764, 1061961548
  %v1791 = vmul.bf16 %v1765, 1061961548
  %v1792 = vmul.bf16 %v1766, 1061961548
  %v1793 = vmul.bf16 %v1767, 1061961548
  %v1794 = vmul.bf16 %v1768, 1061961548
  %v1795 = vmul.bf16 %v1769, 1061961548
  %v1796 = vmul.bf16 %v1770, 1061961548
  %v1797 = vmul.bf16 %v1771, 1061961548
  %v1798 = vmul.bf16 %v1772, 1061961548
  %v1799 = vmul.bf16 %v1773, 1061961548
  %v1800 = vmul.bf16 %v1774, 1061961548
  %v1801 = vmul.bf16 %v1775, 1061961548
  %v1802 = vmul.bf16 %v1776, 1061961548
  %v1803 = vmul.bf16 %v1777, 1061961548
  %v1804 = vmul.bf16 %v1778, 1061961548
  %v1805 = vmul.bf16 %v1779, 1061961548
  %v1806 = vmul.bf16 %v1780, 1061961548
  %v1807 = vmul.bf16 %v1781, 1061961548
  %v1808 = vmul.bf16 %v1782, 1061961548
  %v1809 = vmul.bf16 %v1783, 1061961548
  %v1810 = vmul.bf16 %v1784, 1061961548
  %v1811 = vmul.bf16 %v1785, 1061961548
  %v1812 = vmul.bf16 %v1786, 1061961548
  %v1813 = vmul.bf16 %v1787, 1061961548
  %v1814 = vtanh.bf16.pop %v1788
  %v1815 = vtanh.bf16.pop %v1789
  %v1816 = vtanh.bf16.pop %v1790
  %v1817 = vtanh.bf16.pop %v1791
  %v1818 = vtanh.bf16.pop %v1792
  %v1819 = vtanh.bf16.pop %v1793
  %v1820 = vtanh.bf16.pop %v1794
  %v1821 = vtanh.bf16.pop %v1795
  %v1822 = vtanh.bf16.pop %v1796
  %v1823 = vtanh.bf16.pop %v1797
  %v1824 = vtanh.bf16.pop %v1798
  %v1825 = vtanh.bf16.pop %v1799
  %v1826 = vtanh.bf16.pop %v1800
  %v1827 = vtanh.bf16.pop %v1801
  %v1828 = vtanh.bf16.pop %v1802
  %v1829 = vtanh.bf16.pop %v1803
  %v1830 = vtanh.bf16.pop %v1804
  %v1831 = vtanh.bf16.pop %v1805
  %v1832 = vtanh.bf16.pop %v1806
  %v1833 = vtanh.bf16.pop %v1807
  %v1834 = vtanh.bf16.pop %v1808
  %v1835 = vtanh.bf16.pop %v1809
  %v1836 = vtanh.bf16.pop %v1810
  %v1837 = vtanh.bf16.pop %v1811
  %v1838 = vtanh.bf16.pop %v1812
  %v1839 = vtanh.bf16.pop %v1813
  %v1840 = vadd.bf16 %v1814, 1065369472
  %v1841 = vadd.bf16 %v1815, 1065369472
  %v1842 = vadd.bf16 %v1816, 1065369472
  %v1843 = vadd.bf16 %v1817, 1065369472
  %v1844 = vadd.bf16 %v1818, 1065369472
  %v1845 = vadd.bf16 %v1819, 1065369472
  %v1846 = vadd.bf16 %v1820, 1065369472
  %v1847 = vadd.bf16 %v1821, 1065369472
  %v1848 = vadd.bf16 %v1822, 1065369472
  %v1849 = vadd.bf16 %v1823, 1065369472
  %v1850 = vadd.bf16 %v1824, 1065369472
  %v1851 = vadd.bf16 %v1825, 1065369472
  %v1852 = vadd.bf16 %v1826, 1065369472
  %v1853 = vadd.bf16 %v1827, 1065369472
  %v1854 = vadd.bf16 %v1828, 1065369472
  %v1855 = vadd.bf16 %v1829, 1065369472
  %v1856 = vadd.bf16 %v1830, 1065369472
  %v1857 = vadd.bf16 %v1831, 1065369472
  %v1858 = vadd.bf16 %v1832, 1065369472
  %v1859 = vadd.bf16 %v1833, 1065369472
  %v1860 = vadd.bf16 %v1834, 1065369472
  %v1861 = vadd.bf16 %v1835, 1065369472
  %v1862 = vadd.bf16 %v1836, 1065369472
  %v1863 = vadd.bf16 %v1837, 1065369472
  %v1864 = vadd.bf16 %v1838, 1065369472
  %v1865 = vadd.bf16 %v1839, 1065369472
  %v1866 = vmul.bf16 %v1658, %v1840
  %v1867 = vmul.bf16 %v1659, %v1841
  %v1868 = vmul.bf16 %v1660, %v1842
  %v1869 = vmul.bf16 %v1661, %v1843
  %v1870 = vmul.bf16 %v1662, %v1844
  %v1871 = vmul.bf16 %v1663, %v1845
  %v1872 = vmul.bf16 %v1664, %v1846
  %v1873 = vmul.bf16 %v1665, %v1847
  %v1874 = vmul.bf16 %v1666, %v1848
  %v1875 = vmul.bf16 %v1667, %v1849
  %v1876 = vmul.bf16 %v1668, %v1850
  %v1877 = vmul.bf16 %v1669, %v1851
  %v1878 = vmul.bf16 %v1670, %v1852
  %v1879 = vmul.bf16 %v1671, %v1853
  %v1880 = vmul.bf16 %v1672, %v1854
  %v1881 = vmul.bf16 %v1673, %v1855
  %v1882 = vmul.bf16 %v1674, %v1856
  %v1883 = vmul.bf16 %v1675, %v1857
  %v1884 = vmul.bf16 %v1676, %v1858
  %v1885 = vmul.bf16 %v1677, %v1859
  %v1886 = vmul.bf16 %v1678, %v1860
  %v1887 = vmul.bf16 %v1679, %v1861
  %v1888 = vmul.bf16 %v1680, %v1862
  %v1889 = vmul.bf16 %v1681, %v1863
  %v1890 = vmul.bf16 %v1682, %v1864
  %v1891 = vmul.bf16 %v1683, %v1865
  %v1892 = vld [vmem:[%s4] sm:$0xf]
  %v1893 = vld [vmem:[%s4 + $0x4] sm:$0xf]
  %v1894 = vld [vmem:[%s4 + $0x8] sm:$0xf]
  %v1895 = vld [vmem:[%s4 + $0xc] sm:$0xf]
  %v1896 = vld [vmem:[%s4 + $0x10] sm:$0xf]
  %v1897 = vld [vmem:[%s4 + $0x14] sm:$0xf]
  %v1898 = vld [vmem:[%s4 + $0x18] sm:$0xf]
  %v1899 = vld [vmem:[%s4 + $0x1c] sm:$0xf]
  %v1900 = vld [vmem:[%s4 + $0x20] sm:$0xf]
  %v1901 = vld [vmem:[%s4 + $0x24] sm:$0xf]
  %v1902 = vld [vmem:[%s4 + $0x28] sm:$0xf]
  %v1903 = vld [vmem:[%s4 + $0x2c] sm:$0xf]
  %v1904 = vld [vmem:[%s4 + $0x30] sm:$0xf]
  %v1905 = vld [vmem:[%s4 + $0x34] sm:$0xf]
  %v1906 = vld [vmem:[%s4 + $0x38] sm:$0xf]
  %v1907 = vld [vmem:[%s4 + $0x3c] sm:$0xf]
  %v1908 = vld [vmem:[%s4 + $0x40] sm:$0xf]
  %v1909 = vld [vmem:[%s4 + $0x44] sm:$0xf]
  %v1910 = vld [vmem:[%s4 + $0x48] sm:$0xf]
  %v1911 = vld [vmem:[%s4 + $0x4c] sm:$0xf]
  %v1912 = vld [vmem:[%s4 + $0x50] sm:$0xf]
  %v1913 = vld [vmem:[%s4 + $0x54] sm:$0xf]
  %v1914 = vld [vmem:[%s4 + $0x58] sm:$0xf]
  %v1915 = vld [vmem:[%s4 + $0x5c] sm:$0xf]
  %v1916 = vld [vmem:[%s4 + $0x60] sm:$0xf]
  %v1917 = vld [vmem:[%s4 + $0x64] sm:$0xf]
  %v1918 = vld [vmem:[%s4 + $0x68] sm:$0xf]
  %v1919 = vld [vmem:[%s4 + $0x6c] sm:$0xf]
  %v1920 = vld [vmem:[%s4 + $0x70] sm:$0xf]
  %v1921 = vld [vmem:[%s4 + $0x74] sm:$0xf]
  %v1922 = vld [vmem:[%s4 + $0x78] sm:$0xf]
  %v1923 = vld [vmem:[%s4 + $0x7c] sm:$0xf]
  %v1924 = vlaneseq
  %v1925 = vshrl.u32 %v1924, 7
  %v1926 = vsub.s32 0, %v1925
  %v1927 = vrot.slane %v57, %v1926
  %v1960 = vunpack.c.l.b16 %v1892
  %v1961 = vunpack.c.l.b16 %v1893
  %v1962 = vunpack.c.l.b16 %v1894
  %v1963 = vunpack.c.l.b16 %v1895
  %v1964 = vunpack.c.l.b16 %v1896
  %v1965 = vunpack.c.l.b16 %v1897
  %v1966 = vunpack.c.l.b16 %v1898
  %v1967 = vunpack.c.l.b16 %v1899
  %v1968 = vunpack.c.l.b16 %v1900
  %v1969 = vunpack.c.l.b16 %v1901
  %v1970 = vunpack.c.l.b16 %v1902
  %v1971 = vunpack.c.l.b16 %v1903
  %v1972 = vunpack.c.l.b16 %v1904
  %v1973 = vunpack.c.l.b16 %v1905
  %v1974 = vunpack.c.l.b16 %v1906
  %v1975 = vunpack.c.l.b16 %v1907
  %v1976 = vunpack.c.l.b16 %v1908
  %v1977 = vunpack.c.l.b16 %v1909
  %v1978 = vunpack.c.l.b16 %v1910
  %v1979 = vunpack.c.l.b16 %v1911
  %v1980 = vunpack.c.l.b16 %v1912
  %v1981 = vunpack.c.l.b16 %v1913
  %v1982 = vunpack.c.l.b16 %v1914
  %v1983 = vunpack.c.l.b16 %v1915
  %v1984 = vunpack.c.l.b16 %v1916
  %v1985 = vunpack.c.l.b16 %v1917
  %v1986 = vunpack.c.l.b16 %v1918
  %v1987 = vunpack.c.l.b16 %v1919
  %v1988 = vunpack.c.l.b16 %v1920
  %v1989 = vunpack.c.l.b16 %v1921
  %v1990 = vunpack.c.l.b16 %v1922
  %v1991 = vunpack.c.l.b16 %v1923
  %v1992 = vpack.c.b16 %v1961, %v1960
  %v1993 = vpack.c.b16 %v1963, %v1962
  %v1994 = vpack.c.b16 %v1965, %v1964
  %v1995 = vpack.c.b16 %v1967, %v1966
  %v1996 = vpack.c.b16 %v1969, %v1968
  %v1997 = vpack.c.b16 %v1971, %v1970
  %v1998 = vpack.c.b16 %v1973, %v1972
  %v1999 = vpack.c.b16 %v1975, %v1974
  %v2000 = vpack.c.b16 %v1977, %v1976
  %v2001 = vpack.c.b16 %v1979, %v1978
  %v2002 = vpack.c.b16 %v1981, %v1980
  %v2003 = vpack.c.b16 %v1983, %v1982
  %v2004 = vpack.c.b16 %v1985, %v1984
  %v2005 = vpack.c.b16 %v1987, %v1986
  %v2006 = vpack.c.b16 %v1989, %v1988
  %v2007 = vpack.c.b16 %v1991, %v1990
  %2024 = vmatprep.subr.bf16.mxu0 0
  %2025 = vmatpush1.bf16.msra.mxu0 %v1992
  %2026 = vmatprep.subr.bf16.mxu0 0
  %2027 = vmatpush1.bf16.msra.mxu0 %v1993
  %2028 = vmatprep.subr.bf16.mxu0 0
  %2029 = vmatpush1.bf16.msra.mxu0 %v1994
  %2030 = vmatprep.subr.bf16.mxu0 0
  %2031 = vmatpush1.bf16.msra.mxu0 %v1995
  %2032 = vmatprep.subr.bf16.mxu0 0
  %2033 = vmatpush1.bf16.msra.mxu0 %v1996
  %2034 = vmatprep.subr.bf16.mxu0 0
  %2035 = vmatpush1.bf16.msra.mxu0 %v1997
  %2036 = vmatprep.subr.bf16.mxu0 0
  %2037 = vmatpush1.bf16.msra.mxu0 %v1998
  %2038 = vmatprep.subr.bf16.mxu0 0
  %2039 = vmatpush1.bf16.msra.mxu0 %v1999
  %2040 = vmatprep.subr.bf16.mxu0 0
  %2041 = vmatpush1.bf16.msra.mxu0 %v2000
  %2042 = vmatprep.subr.bf16.mxu0 0
  %2043 = vmatpush1.bf16.msra.mxu0 %v2001
  %2044 = vmatprep.subr.bf16.mxu0 0
  %2045 = vmatpush1.bf16.msra.mxu0 %v2002
  %2046 = vmatprep.subr.bf16.mxu0 0
  %2047 = vmatpush1.bf16.msra.mxu0 %v2003
  %2048 = vmatprep.subr.bf16.mxu0 0
  %2049 = vmatpush1.bf16.msra.mxu0 %v2004
  %2050 = vmatprep.subr.bf16.mxu0 0
  %2051 = vmatpush1.bf16.msra.mxu0 %v2005
  %2052 = vmatprep.subr.bf16.mxu0 0
  %2053 = vmatpush1.bf16.msra.mxu0 %v2006
  %2054 = vmatprep.subr.bf16.mxu0 0
  %2055 = vmatpush1.bf16.msra.mxu0 %v2007
  %2056 = vmatprep.mubr.bf16.mxu0 %v1867
  %2057 = vmatmul.mubr.bf16.gmra.mrb[0].mxu0 %v1866
  %v2058 = vpop.f32.mrb[0].mxu0
  %v2059 = vadd.f32 %v1927, %v2058
  %v2060 = vpop.f32.mrb[0].mxu0
  %v2061 = vpop.f32.mrb[0].mxu0
  %v2062 = vadd.f32 %v1927, %v2061
  %v2063 = vpop.f32.mrb[0].mxu0
  %2064 = vmatprep.mubr.bf16.mxu0 %v1869
  %2065 = vmatmul.mubr.bf16.gmra.mrb[0].mxu0 %v1868
  %v2066 = vpop.f32.mrb[0].mxu0
  %v2067 = vadd.f32 %v1927, %v2066
  %v2068 = vpop.f32.mrb[0].mxu0
  %v2069 = vpop.f32.mrb[0].mxu0
  %v2070 = vadd.f32 %v1927, %v2069
  %v2071 = vpop.f32.mrb[0].mxu0
  %2072 = vmatprep.mubr.bf16.mxu0 %v1871
  %2073 = vmatmul.mubr.bf16.gmra.mrb[0].mxu0 %v1870
  %v2074 = vpop.f32.mrb[0].mxu0
  %v2075 = vadd.f32 %v1927, %v2074
  %v2076 = vpop.f32.mrb[0].mxu0
  %v2077 = vpop.f32.mrb[0].mxu0
  %v2078 = vadd.f32 %v1927, %v2077
  %v2079 = vpop.f32.mrb[0].mxu0
  %2080 = vmatprep.mubr.bf16.mxu0 %v1873
  %2081 = vmatmul.mubr.bf16.gmra.mrb[0].mxu0 %v1872
  %v2082 = vpop.f32.mrb[0].mxu0
  %v2083 = vadd.f32 %v1927, %v2082
  %v2084 = vpop.f32.mrb[0].mxu0
  %v2085 = vpop.f32.mrb[0].mxu0
  %v2086 = vadd.f32 %v1927, %v2085
  %v2087 = vpop.f32.mrb[0].mxu0
  %2088 = vmatprep.mubr.bf16.mxu0 %v1875
  %2089 = vmatmul.mubr.bf16.gmra.mrb[0].mxu0 %v1874
  %v2090 = vpop.f32.mrb[0].mxu0
  %v2091 = vadd.f32 %v1927, %v2090
  %v2092 = vpop.f32.mrb[0].mxu0
  %v2093 = vpop.f32.mrb[0].mxu0
  %v2094 = vadd.f32 %v1927, %v2093
  %v2095 = vpop.f32.mrb[0].mxu0
  %2096 = vmatprep.mubr.bf16.mxu0 %v1877
  %2097 = vmatmul.mubr.bf16.gmra.mrb[0].mxu0 %v1876
  %v2098 = vpop.f32.mrb[0].mxu0
  %v2099 = vadd.f32 %v1927, %v2098
  %v2100 = vpop.f32.mrb[0].mxu0
  %v2101 = vpop.f32.mrb[0].mxu0
  %v2102 = vadd.f32 %v1927, %v2101
  %v2103 = vpop.f32.mrb[0].mxu0
  %2104 = vmatprep.mubr.bf16.mxu0 %v1879
  %2105 = vmatmul.mubr.bf16.gmra.mrb[0].mxu0 %v1878
  %v2106 = vpop.f32.mrb[0].mxu0
  %v2107 = vadd.f32 %v1927, %v2106
  %v2108 = vpop.f32.mrb[0].mxu0
  %v2109 = vpop.f32.mrb[0].mxu0
  %v2110 = vadd.f32 %v1927, %v2109
  %v2111 = vpop.f32.mrb[0].mxu0
  %2112 = vmatprep.mubr.bf16.mxu0 %v1881
  %2113 = vmatmul.mubr.bf16.gmra.mrb[0].mxu0 %v1880
  %v2114 = vpop.f32.mrb[0].mxu0
  %v2115 = vadd.f32 %v1927, %v2114
  %v2116 = vpop.f32.mrb[0].mxu0
  %v2117 = vpop.f32.mrb[0].mxu0
  %v2118 = vadd.f32 %v1927, %v2117
  %v2119 = vpop.f32.mrb[0].mxu0
  %2120 = vmatprep.mubr.bf16.mxu0 %v1883
  %2121 = vmatmul.mubr.bf16.gmra.mrb[0].mxu0 %v1882
  %v2122 = vpop.f32.mrb[0].mxu0
  %v2123 = vadd.f32 %v1927, %v2122
  %v2124 = vpop.f32.mrb[0].mxu0
  %v2125 = vpop.f32.mrb[0].mxu0
  %v2126 = vadd.f32 %v1927, %v2125
  %v2127 = vpop.f32.mrb[0].mxu0
  %2128 = vmatprep.mubr.bf16.mxu0 %v1885
  %2129 = vmatmul.mubr.bf16.gmra.mrb[0].mxu0 %v1884
  %v2130 = vpop.f32.mrb[0].mxu0
  %v2131 = vadd.f32 %v1927, %v2130
  %v2132 = vpop.f32.mrb[0].mxu0
  %v2133 = vpop.f32.mrb[0].mxu0
  %v2134 = vadd.f32 %v1927, %v2133
  %v2135 = vpop.f32.mrb[0].mxu0
  %2136 = vmatprep.mubr.bf16.mxu0 %v1887
  %2137 = vmatmul.mubr.bf16.gmra.mrb[0].mxu0 %v1886
  %v2138 = vpop.f32.mrb[0].mxu0
  %v2139 = vadd.f32 %v1927, %v2138
  %v2140 = vpop.f32.mrb[0].mxu0
  %v2141 = vpop.f32.mrb[0].mxu0
  %v2142 = vadd.f32 %v1927, %v2141
  %v2143 = vpop.f32.mrb[0].mxu0
  %2144 = vmatprep.mubr.bf16.mxu0 %v1889
  %2145 = vmatmul.mubr.bf16.gmra.mrb[0].mxu0 %v1888
  %v2146 = vpop.f32.mrb[0].mxu0
  %v2147 = vadd.f32 %v1927, %v2146
  %v2148 = vpop.f32.mrb[0].mxu0
  %v2149 = vpop.f32.mrb[0].mxu0
  %v2150 = vadd.f32 %v1927, %v2149
  %v2151 = vpop.f32.mrb[0].mxu0
  %2152 = vmatprep.mubr.bf16.mxu0 %v1891
  %2153 = vmatmul.mubr.bf16.gmra.mrb[0].mxu0 %v1890
  %v2154 = vpop.f32.mrb[0].mxu0
  %v2155 = vadd.f32 %v1927, %v2154
  %v2156 = vpop.f32.mrb[0].mxu0
  %v2157 = vpop.f32.mrb[0].mxu0
  %v2158 = vpop.f32.mrb[0].mxu0
  %2159 = vdwg.mxu0
  %v2160 = vtanh.pop %v2059
  %v2161 = vtanh.pop %v2062
  %v2162 = vtanh.pop %v2067
  %v2163 = vtanh.pop %v2070
  %v2164 = vtanh.pop %v2075
  %v2165 = vtanh.pop %v2078
  %v2166 = vtanh.pop %v2083
  %v2167 = vtanh.pop %v2086
  %v2168 = vtanh.pop %v2091
  %v2169 = vtanh.pop %v2094
  %v2170 = vtanh.pop %v2099
  %v2171 = vtanh.pop %v2102
  %v2172 = vtanh.pop %v2107
  %v2173 = vtanh.pop %v2110
  %v2174 = vtanh.pop %v2115
  %v2175 = vtanh.pop %v2118
  %v2176 = vtanh.pop %v2123
  %v2177 = vtanh.pop %v2126
  %v2178 = vtanh.pop %v2131
  %v2179 = vtanh.pop %v2134
  %v2180 = vtanh.pop %v2139
  %v2181 = vtanh.pop %v2142
  %v2182 = vtanh.pop %v2147
  %v2183 = vtanh.pop %v2150
  %v2184 = vtanh.pop %v2155
  %v2185 = vlaneseq
  %v2186 = vshrl.u32 %v2185, 7
  %v2187 = vsub.s32 1, %v2186
  %v2188 = vrot.slane %v57, %v2187
  %v2189 = vmul.f32 %v2160, %v2188
  %v2190 = vmul.f32 %v2161, %v2188
  %v2191 = vmul.f32 %v2162, %v2188
  %v2192 = vmul.f32 %v2163, %v2188
  %v2193 = vmul.f32 %v2164, %v2188
  %v2194 = vmul.f32 %v2165, %v2188
  %v2195 = vmul.f32 %v2166, %v2188
  %v2196 = vmul.f32 %v2167, %v2188
  %v2197 = vmul.f32 %v2168, %v2188
  %v2198 = vmul.f32 %v2169, %v2188
  %v2199 = vmul.f32 %v2170, %v2188
  %v2200 = vmul.f32 %v2171, %v2188
  %v2201 = vmul.f32 %v2172, %v2188
  %v2202 = vmul.f32 %v2173, %v2188
  %v2203 = vmul.f32 %v2174, %v2188
  %v2204 = vmul.f32 %v2175, %v2188
  %v2205 = vmul.f32 %v2176, %v2188
  %v2206 = vmul.f32 %v2177, %v2188
  %v2207 = vmul.f32 %v2178, %v2188
  %v2208 = vmul.f32 %v2179, %v2188
  %v2209 = vmul.f32 %v2180, %v2188
  %v2210 = vmul.f32 %v2181, %v2188
  %v2211 = vmul.f32 %v2182, %v2188
  %v2212 = vmul.f32 %v2183, %v2188
  %v2213 = vmul.f32 %v2184, %v2188
  %v2214 = vlaneseq
  %v2215 = vshrl.u32 %v2214, 7
  %v2216 = vsub.s32 2, %v2215
  %v2217 = vrot.slane %v57, %v2216
  %v2218 = vadd.f32 %v2189, %v2217
  %v2219 = vadd.f32 %v2190, %v2217
  %v2220 = vadd.f32 %v2191, %v2217
  %v2221 = vadd.f32 %v2192, %v2217
  %v2222 = vadd.f32 %v2193, %v2217
  %v2223 = vadd.f32 %v2194, %v2217
  %v2224 = vadd.f32 %v2195, %v2217
  %v2225 = vadd.f32 %v2196, %v2217
  %v2226 = vadd.f32 %v2197, %v2217
  %v2227 = vadd.f32 %v2198, %v2217
  %v2228 = vadd.f32 %v2199, %v2217
  %v2229 = vadd.f32 %v2200, %v2217
  %v2230 = vadd.f32 %v2201, %v2217
  %v2231 = vadd.f32 %v2202, %v2217
  %v2232 = vadd.f32 %v2203, %v2217
  %v2233 = vadd.f32 %v2204, %v2217
  %v2234 = vadd.f32 %v2205, %v2217
  %v2235 = vadd.f32 %v2206, %v2217
  %v2236 = vadd.f32 %v2207, %v2217
  %v2237 = vadd.f32 %v2208, %v2217
  %v2238 = vadd.f32 %v2209, %v2217
  %v2239 = vadd.f32 %v2210, %v2217
  %v2240 = vadd.f32 %v2211, %v2217
  %v2241 = vadd.f32 %v2212, %v2217
  %v2242 = vadd.f32 %v2213, %v2217
  %vm2243 = vcmask 31744
  %2244 = vst.msk [vmem:[%s7] sm:$0xff] %vm2243, %v2218
  %2245 = vst.msk [vmem:[%s7 + $0x8] sm:$0xff] %vm2243, %v2219
  %2246 = vst.msk [vmem:[%s7 + $0x10] sm:$0xff] %vm2243, %v2220
  %2247 = vst.msk [vmem:[%s7 + $0x18] sm:$0xff] %vm2243, %v2221
  %2248 = vst.msk [vmem:[%s7 + $0x20] sm:$0xff] %vm2243, %v2222
  %2249 = vst.msk [vmem:[%s7 + $0x28] sm:$0xff] %vm2243, %v2223
  %2250 = vst.msk [vmem:[%s7 + $0x30] sm:$0xff] %vm2243, %v2224
  %2251 = vst.msk [vmem:[%s7 + $0x38] sm:$0xff] %vm2243, %v2225
  %2252 = vst.msk [vmem:[%s7 + $0x40] sm:$0xff] %vm2243, %v2226
  %2253 = vst.msk [vmem:[%s7 + $0x48] sm:$0xff] %vm2243, %v2227
  %2254 = vst.msk [vmem:[%s7 + $0x50] sm:$0xff] %vm2243, %v2228
  %2255 = vst.msk [vmem:[%s7 + $0x58] sm:$0xff] %vm2243, %v2229
  %2256 = vst.msk [vmem:[%s7 + $0x60] sm:$0xff] %vm2243, %v2230
  %2257 = vst.msk [vmem:[%s7 + $0x68] sm:$0xff] %vm2243, %v2231
  %2258 = vst.msk [vmem:[%s7 + $0x70] sm:$0xff] %vm2243, %v2232
  %2259 = vst.msk [vmem:[%s7 + $0x78] sm:$0xff] %vm2243, %v2233
  %2260 = vst.msk [vmem:[%s7 + $0x80] sm:$0xff] %vm2243, %v2234
  %2261 = vst.msk [vmem:[%s7 + $0x88] sm:$0xff] %vm2243, %v2235
  %2262 = vst.msk [vmem:[%s7 + $0x90] sm:$0xff] %vm2243, %v2236
  %2263 = vst.msk [vmem:[%s7 + $0x98] sm:$0xff] %vm2243, %v2237
  %2264 = vst.msk [vmem:[%s7 + $0xa0] sm:$0xff] %vm2243, %v2238
  %2265 = vst.msk [vmem:[%s7 + $0xa8] sm:$0xff] %vm2243, %v2239
  %2266 = vst.msk [vmem:[%s7 + $0xb0] sm:$0xff] %vm2243, %v2240
  %2267 = vst.msk [vmem:[%s7 + $0xb8] sm:$0xff] %vm2243, %v2241
  %2268 = vst.msk [vmem:[%s7 + $0xc0] sm:$0xff] %vm2243, %v2242
  // Predicated region
  $region30: #{_lambda_.1} parent=0 // pred_check
    _
  $region31: #{_lambda_.1} parent=0 // pred_check_branch
    %2270 = sbr.rel (0) target = $region33
  $region32: #{_lambda_.1} parent=0 // pred_region
    _
  $region33: #{_lambda_.1} parent=0 // pred_fallthru
    _
  // Predicated region
  $region34: #{_lambda_.1} parent=0 // pred_check
    _
  $region35: #{_lambda_.1} parent=0 // pred_check_branch
    %2272 = sbr.rel (0) target = $region37
  $region36: #{_lambda_.1} parent=0 // pred_region
    _
  $region37: #{_lambda_.1} parent=0 // pred_fallthru
    _

</llo_original>
